<compile_context>
chip_gen: v5e
topology: v5e:2x2
jax: 0.10.0
libtpu: 0.0.40
codegen_flags: <defaults>
</compile_context>

<pallas_src>
import math

import jax
import jax.numpy as jnp
from jax.experimental import pallas as pl
from jax.experimental.pallas import tpu as pltpu

CONV_PARAMS = ("w1a", "b1a", "w1b", "b1b", "wd_w", "wd_b",
               "w2a", "b2a", "w2b", "b2b",
               "w3a", "b3a", "w3b", "b3b")


# ---------------- kernel-side helpers (traced inside the Pallas kernel) -------

def _shift_right(h, j):
    """Shift lanes right by j (static).  The first j columns are junk, but
    they only ever land in per-sample causal-pad columns, which the caller
    re-zeros with the mask.
    # TODO(synk): pltpu.roll could do this shift in the XLU rotate slot;
    # static slices + concat kept as the proven-portable construction."""
    n = h.shape[1]
    return jnp.concatenate([h[:, :j], h[:, :n - j]], axis=1)


def _causal_conv(h, wcat_ref, b_ref):
    """Fused-tap causal conv: h (Cin, N) f32 -> (Cout, N) f32.

    wcat_ref holds bf16 (Cout, K*Cin); columns [j*Cin:(j+1)*Cin] multiply the
    input shifted right by j lanes.  One bf16 MXU matmul, f32 accumulation."""
    cin, _ = h.shape
    k = wcat_ref.shape[1] // cin
    parts = [h] + [_shift_right(h, j) for j in range(1, k)]   # static, K-1
    stacked = jnp.concatenate(parts, axis=0).astype(jnp.bfloat16)  # (K*Cin, N)
    return jnp.dot(wcat_ref[...], stacked,
                   preferred_element_type=jnp.float32) + b_ref[...]


def _temporal_block(x, wa, ba, wb, bb, mask, wd=None, bd=None):
    """conv1+chomp+relu(+dropout) -> conv2+chomp+relu(+dropout), residual
    (1x1 downsample if present), final relu.  Dropout = identity (eval).
    `mask` re-zeros each sample's causal-pad columns (required for
    correctness: it is what keeps samples from leaking into each other)."""
    h = jnp.maximum(_causal_conv(x, wa, ba), 0.0) * mask
    h = jnp.maximum(_causal_conv(h, wb, bb), 0.0)
    if wd is None:
        res = x
    else:
        res = jnp.dot(wd[...], x.astype(jnp.bfloat16),
                      preferred_element_type=jnp.float32) + bd[...]
    return jnp.maximum(h + res, 0.0) * mask


# ------------------------------- Pallas kernels --------------------------------

def tcn_blocks_kernel(x_ref, mask_ref,
                      w1a, b1a, w1b, b1b, wd_w, wd_b,
                      w2a, b2a, w2b, b2b,
                      w3a, b3a, w3b, b3b,
                      o_ref):
    tb, _, l = o_ref.shape                                   # (TB, Ch, L)
    lp = x_ref.shape[1] // tb                                 # padded per-sample len
    pad = lp - l
    mask = mask_ref[...]                                      # (1, TB*Lp) f32
    x = x_ref[...].astype(jnp.float32)                        # (C0, TB*Lp)
    o1 = _temporal_block(x, w1a, b1a, w1b, b1b, mask, wd_w, wd_b)
    o2 = _temporal_block(o1, w2a, b2a, w2b, b2b, mask)
    o3 = _temporal_block(o2, w3a, b3a, w3b, b3b, mask).astype(o_ref.dtype)
    # Per-sample extraction of the real columns: replaces the old (Ch, B*Lp)
    # output + XLA transpose + extra HBM round trip before the FC kernel.
    for s in range(tb):                                       # static, unrolled
        o_ref[s] = o3[:, s * lp + pad: s * lp + lp]           # (Ch, L)


def fc_kernel(x_ref, w1_ref, b1_ref, w2_ref, b2_ref, o_ref):
    h = jnp.dot(x_ref[...], w1_ref[...],                      # bf16 @ bf16 -> f32
                preferred_element_type=jnp.float32) + b1_ref[...]
    y = jnp.dot(h.astype(jnp.bfloat16), w2_ref[...],
                preferred_element_type=jnp.float32) + b2_ref[...]
    o_ref[...] = y.astype(o_ref.dtype)                        # (TBf, Lout)


# ---------------------------------- wrapper ------------------------------------

def _fuse_taps(w):
    """(K, Cout, Cin) per-tap weights -> (Cout, K*Cin) fused weight where the
    block applied to the input shifted right by j is original tap K-1-j."""
    k, cout, cin = w.shape
    return jnp.transpose(w[::-1], (1, 0, 2)).reshape(cout, k * cin)


def _prep_conv_weights(params):
    out = []
    for name in CONV_PARAMS:
        w = params[name]
        if w.ndim == 3:                       # conv weight (K, Cout, Cin)
            out.append(_fuse_taps(w).astype(jnp.bfloat16))
        elif name == "wd_w":                  # 1x1 downsample weight
            out.append(w.astype(jnp.bfloat16))
        else:                                 # biases stay f32
            out.append(w.astype(jnp.float32))
    return out


def tcn_forward(x, params, *, ker_size, batch_tile=32, fc_batch_tile=128):
    """x: (B, C0, L) float32 -> (B, Lout, 1) float32."""
    B, C0, L = x.shape
    K = ker_size
    Ch = params["b1a"].shape[0]
    Lout = params["wf2"].shape[1]

    TB = min(batch_tile, B)
    assert B % TB == 0, "batch must be divisible by the conv batch tile"
    TBf = B if B <= fc_batch_tile else fc_batch_tile
    assert B % TBf == 0, "batch must be divisible by the fc batch tile"

    # Per-sample padded length: >= L + (K-1) causal zeros, with TB*Lp a
    # multiple of 128 so every conv activation block is lane-dense.
    lane_q = 128 // math.gcd(TB, 128)
    Lp = pl.cdiv(L + K - 1, lane_q) * lane_q
    N = TB * Lp
    pad = Lp - L

    # ---- layout plumbing in XLA (cheap; bf16 halves activation HBM traffic) --
    xp = jnp.pad(x.astype(jnp.float32), ((0, 0), (0, 0), (pad, 0)))   # (B,C0,Lp)
    x2 = jnp.transpose(xp, (1, 0, 2)).reshape(C0, B * Lp).astype(jnp.bfloat16)
    mask = jnp.tile(jnp.concatenate([jnp.zeros((pad,), jnp.float32),
                                     jnp.ones((L,), jnp.float32)]),
                    TB).reshape(1, N)
    conv_ws = _prep_conv_weights(params)
    wf1 = params["wf1"].astype(jnp.bfloat16)
    wf2 = params["wf2"].astype(jnp.bfloat16)
    bf1 = params["bf1"].astype(jnp.float32)
    bf2 = params["bf2"].astype(jnp.float32)

    # Explicit scoped-VMEM limit: v5e defaults to 16 MiB which would reject
    # larger tiles; 32 MiB is safe on v5e/v6e/v7x at these sizes.
    # TODO(synk): on v6e with the real 10240x512 wf1, raise this and keep wf1
    # resident; on v7x stream wf1 instead.
    cp = pltpu.CompilerParams(
        dimension_semantics=("parallel",),
        vmem_limit_bytes=32 * 1024 * 1024)

    const2d = lambda i: (0, 0)

    # Kernel A: three temporal blocks, channels-first, TB samples per step.
    # Output is already per-sample (B, Ch, L) bf16 -> no XLA transpose and no
    # extra HBM round trip before the FC kernel.
    o3 = pl.pallas_call(
        tcn_blocks_kernel,
        out_shape=jax.ShapeDtypeStruct((B, Ch, L), jnp.bfloat16),
        grid=(B // TB,),
        in_specs=[pl.BlockSpec((C0, N), lambda i: (0, i)),      # activations
                  pl.BlockSpec((1, N), const2d)]                # pad mask
                 + [pl.BlockSpec(w.shape, const2d) for w in conv_ws],
        out_specs=pl.BlockSpec((TB, Ch, L), lambda i: (i, 0, 0)),
        compiler_params=cp,
    )(x2, mask, *conv_ws)

    # (B, Ch, L) -> (B, Ch*L): contiguous row-major reshape == torch's
    # out_tcn3.reshape(batch, -1) on an NCL tensor.  Free layout-wise.
    o3_flat = o3.reshape(B, Ch * L)

    # Kernel B: fc1 + fc2 as two dense bf16 matmuls with a large M tile.
    out = pl.pallas_call(
        fc_kernel,
        out_shape=jax.ShapeDtypeStruct((B, Lout), jnp.float32),
        grid=(B // TBf,),
        in_specs=[pl.BlockSpec((TBf, Ch * L), lambda i: (i, 0)),
                  pl.BlockSpec(wf1.shape, const2d),
                  pl.BlockSpec(bf1.shape, const2d),
                  pl.BlockSpec(wf2.shape, const2d),
                  pl.BlockSpec(bf2.shape, const2d)],
        out_specs=pl.BlockSpec((TBf, Lout), lambda i: (i, 0)),
        compiler_params=cp,
    )(o3_flat, wf1, bf1, wf2, bf2)

    return out.reshape(B, Lout, 1)


# --------------------------- pure-JAX reference check --------------------------

def ref_forward(x, p, *, ker_size):
    """Reference with the same bf16-operand / f32-accumulate matmuls, so the
    comparison isolates kernel indexing/structure rather than bf16 rounding."""
    K = ker_size
    bf, f32 = jnp.bfloat16, jnp.float32

    def mm(w, h):                                   # (O,C) x (B,C,L) -> (B,O,L)
        return jnp.einsum("oc,bcl->bol", w.astype(bf), h.astype(bf),
                          preferred_element_type=f32)

    def cconv(h, w, b):
        L = h.shape[-1]
        hp = jnp.pad(h.astype(f32), ((0, 0), (0, 0), (K - 1, 0)))
        acc = jnp.zeros((h.shape[0], w.shape[1], L), f32)
        for j in range(K):
            acc = acc + mm(w[j], hp[:, :, j:j + L])
        return acc + b[None]

    def block(h, wa, ba, wb, bb, wd=None, bd=None):
        u = jnp.maximum(cconv(h, wa, ba), 0.0)
        u = jnp.maximum(cconv(u, wb, bb), 0.0)
        res = h if wd is None else mm(wd, h) + bd[None]
        return jnp.maximum(u + res, 0.0)

    o1 = block(x, p["w1a"], p["b1a"], p["w1b"], p["b1b"], p["wd_w"], p["wd_b"])
    o2 = block(o1, p["w2a"], p["b2a"], p["w2b"], p["b2b"])
    o3 = block(o2, p["w3a"], p["b3a"], p["w3b"], p["b3b"])
    flat = o3.reshape(o3.shape[0], -1)                        # c-major then l
    h = jnp.dot(flat.astype(bf), p["wf1"].astype(bf),
                preferred_element_type=f32) + p["bf1"]
    y = jnp.dot(h.astype(bf), p["wf2"].astype(bf),
                preferred_element_type=f32) + p["bf2"]
    return y.reshape(x.shape[0], -1, 1)


# ------------------------------------ main -------------------------------------

if __name__ == "__main__":
    # Small shapes consistent with the module's forward:
    #   X_cont: (batch, q_len=length_in, features_in); conv in-channels = q_len.
    # The original hard-codes fc1 in_features = 10240 (= num_channels *
    # features_in) and hidden = 512; scaled down here to Ch*L = 256 -> H = 32.
    B, C0, L = 64, 8, 16              # batch, length_in (conv channels), features_in
    Ch, K, H, Lout = 16, 3, 32, 8     # num_channels, ker_size, fc hidden, length_out

    key = jax.random.PRNGKey(0)
    keys = jax.random.split(key, 20)

    def nrm(k, shape, s=0.1):
        return (s * jax.random.normal(k, shape)).astype(jnp.float32)

    params = {
        "w1a": nrm(keys[0], (K, Ch, C0)), "b1a": nrm(keys[1], (Ch, 1)),
        "w1b": nrm(keys[2], (K, Ch, Ch)), "b1b": nrm(keys[3], (Ch, 1)),
        "wd_w": nrm(keys[4], (Ch, C0)),   "wd_b": nrm(keys[5], (Ch, 1)),
        "w2a": nrm(keys[6], (K, Ch, Ch)), "b2a": nrm(keys[7], (Ch, 1)),
        "w2b": nrm(keys[8], (K, Ch, Ch)), "b2b": nrm(keys[9], (Ch, 1)),
        "w3a": nrm(keys[10], (K, Ch, Ch)), "b3a": nrm(keys[11], (Ch, 1)),
        "w3b": nrm(keys[12], (K, Ch, Ch)), "b3b": nrm(keys[13], (Ch, 1)),
        "wf1": nrm(keys[14], (Ch * L, H)), "bf1": nrm(keys[15], (1, H)),
        "wf2": nrm(keys[16], (H, Lout)),   "bf2": nrm(keys[17], (1, Lout)),
    }
    x = jax.random.normal(keys[18], (B, C0, L), dtype=jnp.float32)

    out = jax.block_until_ready(
        tcn_forward(x, params, ker_size=K, batch_tile=32))
    ref = jax.block_until_ready(ref_forward(x, params, ker_size=K))

    assert out.shape == (B, Lout, 1), out.shape
    err = float(jnp.max(jnp.abs(out - ref)))
    assert err < 2e-3, f"mismatch vs bf16-matched JAX reference: max abs err {err}"
    print("KERNEL_OK")
</pallas_src>

<mosaic_0001>
module attributes {stable_mosaic.version = 11 : i64} {
  func.func @tcn_blocks_kernel(%arg0: i32, %arg1: memref<8x640xbf16, #tpu.memory_space<vmem>>, %arg2: memref<1x640xf32, #tpu.memory_space<vmem>>, %arg3: memref<16x24xbf16, #tpu.memory_space<vmem>>, %arg4: memref<16x1xf32, #tpu.memory_space<vmem>>, %arg5: memref<16x48xbf16, #tpu.memory_space<vmem>>, %arg6: memref<16x1xf32, #tpu.memory_space<vmem>>, %arg7: memref<16x8xbf16, #tpu.memory_space<vmem>>, %arg8: memref<16x1xf32, #tpu.memory_space<vmem>>, %arg9: memref<16x48xbf16, #tpu.memory_space<vmem>>, %arg10: memref<16x1xf32, #tpu.memory_space<vmem>>, %arg11: memref<16x48xbf16, #tpu.memory_space<vmem>>, %arg12: memref<16x1xf32, #tpu.memory_space<vmem>>, %arg13: memref<16x48xbf16, #tpu.memory_space<vmem>>, %arg14: memref<16x1xf32, #tpu.memory_space<vmem>>, %arg15: memref<16x48xbf16, #tpu.memory_space<vmem>>, %arg16: memref<16x1xf32, #tpu.memory_space<vmem>>, %arg17: memref<32x16x16xbf16, #tpu.memory_space<vmem>>) attributes {dimension_semantics = [#tpu.dimension_semantics<parallel>], iteration_bounds = array<i64: 2>, scalar_prefetch = 0 : i64, scratch_operands = 0 : i64, tpu.core_type = #tpu.core_type<tc>, window_params = [{transform_indices = @transform_0, window_bounds = array<i64: 8, 640>}, {pipeline_mode = #tpu.pipeline_mode<synchronous>, transform_indices = @transform_1, window_bounds = array<i64: 1, 640>}, {pipeline_mode = #tpu.pipeline_mode<synchronous>, transform_indices = @transform_2, window_bounds = array<i64: 16, 24>}, {pipeline_mode = #tpu.pipeline_mode<synchronous>, transform_indices = @transform_3, window_bounds = array<i64: 16, 1>}, {pipeline_mode = #tpu.pipeline_mode<synchronous>, transform_indices = @transform_4, window_bounds = array<i64: 16, 48>}, {pipeline_mode = #tpu.pipeline_mode<synchronous>, transform_indices = @transform_5, window_bounds = array<i64: 16, 1>}, {pipeline_mode = #tpu.pipeline_mode<synchronous>, transform_indices = @transform_6, window_bounds = array<i64: 16, 8>}, {pipeline_mode = #tpu.pipeline_mode<synchronous>, transform_indices = @transform_7, window_bounds = array<i64: 16, 1>}, {pipeline_mode = #tpu.pipeline_mode<synchronous>, transform_indices = @transform_8, window_bounds = array<i64: 16, 48>}, {pipeline_mode = #tpu.pipeline_mode<synchronous>, transform_indices = @transform_9, window_bounds = array<i64: 16, 1>}, {pipeline_mode = #tpu.pipeline_mode<synchronous>, transform_indices = @transform_10, window_bounds = array<i64: 16, 48>}, {pipeline_mode = #tpu.pipeline_mode<synchronous>, transform_indices = @transform_11, window_bounds = array<i64: 16, 1>}, {pipeline_mode = #tpu.pipeline_mode<synchronous>, transform_indices = @transform_12, window_bounds = array<i64: 16, 48>}, {pipeline_mode = #tpu.pipeline_mode<synchronous>, transform_indices = @transform_13, window_bounds = array<i64: 16, 1>}, {pipeline_mode = #tpu.pipeline_mode<synchronous>, transform_indices = @transform_14, window_bounds = array<i64: 16, 48>}, {pipeline_mode = #tpu.pipeline_mode<synchronous>, transform_indices = @transform_15, window_bounds = array<i64: 16, 1>}, {transform_indices = @transform_16, window_bounds = array<i64: 32, 16, 16>}]} {
    %c0 = arith.constant 0 : index
    %c0_0 = arith.constant 0 : index
    %0 = vector.load %arg2[%c0, %c0_0] : memref<1x640xf32, #tpu.memory_space<vmem>>, vector<1x640xf32>
    %c0_1 = arith.constant 0 : index
    %c0_2 = arith.constant 0 : index
    %1 = vector.load %arg1[%c0_1, %c0_2] : memref<8x640xbf16, #tpu.memory_space<vmem>>, vector<8x640xbf16>
    %2 = arith.extf %1 : vector<8x640xbf16> to vector<8x640xf32>
    %3 = vector.extract_strided_slice %2 {offsets = [0, 0], sizes = [8, 1], strides = [1, 1]} : vector<8x640xf32> to vector<8x1xf32>
    %4 = vector.extract_strided_slice %2 {offsets = [0, 0], sizes = [8, 639], strides = [1, 1]} : vector<8x640xf32> to vector<8x639xf32>
    %5 = tpu.concatenate %3, %4 in 1 : vector<8x1xf32>, vector<8x639xf32> -> vector<8x640xf32>
    %6 = vector.extract_strided_slice %2 {offsets = [0, 0], sizes = [8, 2], strides = [1, 1]} : vector<8x640xf32> to vector<8x2xf32>
    %7 = vector.extract_strided_slice %2 {offsets = [0, 0], sizes = [8, 638], strides = [1, 1]} : vector<8x640xf32> to vector<8x638xf32>
    %8 = tpu.concatenate %6, %7 in 1 : vector<8x2xf32>, vector<8x638xf32> -> vector<8x640xf32>
    %9 = tpu.concatenate %2, %5, %8 in 0 : vector<8x640xf32>, vector<8x640xf32>, vector<8x640xf32> -> vector<24x640xf32>
    %10 = arith.truncf %9 : vector<24x640xf32> to vector<24x640xbf16>
    %c0_3 = arith.constant 0 : index
    %c0_4 = arith.constant 0 : index
    %11 = vector.load %arg3[%c0_3, %c0_4] : memref<16x24xbf16, #tpu.memory_space<vmem>>, vector<16x24xbf16>
    %cst = arith.constant dense<0.000000e+00> : vector<16x640xf32>
    %12 = tpu.matmul %11, %10, %cst {dimension_numbers = #tpu.dot_dimension_numbers<[1], [0], [0], [1], [0, 0, 1, 1], [], []>} : vector<16x24xbf16>, vector<24x640xbf16>, vector<16x640xf32> -> vector<16x640xf32>
    %c0_5 = arith.constant 0 : index
    %c0_6 = arith.constant 0 : index
    %13 = vector.load %arg4[%c0_5, %c0_6] : memref<16x1xf32, #tpu.memory_space<vmem>>, vector<16x1xf32>
    %14 = vector.broadcast %13 : vector<16x1xf32> to vector<16x640xf32>
    %15 = arith.addf %12, %14 : vector<16x640xf32>
    %cst_7 = arith.constant 0.000000e+00 : f32
    %16 = vector.broadcast %cst_7 : f32 to vector<16x640xf32>
    %17 = arith.maximumf %15, %16 : vector<16x640xf32>
    %18 = vector.broadcast %0 : vector<1x640xf32> to vector<16x640xf32>
    %19 = arith.mulf %17, %18 : vector<16x640xf32>
    %20 = vector.extract_strided_slice %19 {offsets = [0, 0], sizes = [16, 1], strides = [1, 1]} : vector<16x640xf32> to vector<16x1xf32>
    %21 = vector.extract_strided_slice %19 {offsets = [0, 0], sizes = [16, 639], strides = [1, 1]} : vector<16x640xf32> to vector<16x639xf32>
    %22 = tpu.concatenate %20, %21 in 1 : vector<16x1xf32>, vector<16x639xf32> -> vector<16x640xf32>
    %23 = vector.extract_strided_slice %19 {offsets = [0, 0], sizes = [16, 2], strides = [1, 1]} : vector<16x640xf32> to vector<16x2xf32>
    %24 = vector.extract_strided_slice %19 {offsets = [0, 0], sizes = [16, 638], strides = [1, 1]} : vector<16x640xf32> to vector<16x638xf32>
    %25 = tpu.concatenate %23, %24 in 1 : vector<16x2xf32>, vector<16x638xf32> -> vector<16x640xf32>
    %26 = tpu.concatenate %19, %22, %25 in 0 : vector<16x640xf32>, vector<16x640xf32>, vector<16x640xf32> -> vector<48x640xf32>
    %27 = arith.truncf %26 : vector<48x640xf32> to vector<48x640xbf16>
    %c0_8 = arith.constant 0 : index
    %c0_9 = arith.constant 0 : index
    %28 = vector.load %arg5[%c0_8, %c0_9] : memref<16x48xbf16, #tpu.memory_space<vmem>>, vector<16x48xbf16>
    %cst_10 = arith.constant dense<0.000000e+00> : vector<16x640xf32>
    %29 = tpu.matmul %28, %27, %cst_10 {dimension_numbers = #tpu.dot_dimension_numbers<[1], [0], [0], [1], [0, 0, 1, 1], [], []>} : vector<16x48xbf16>, vector<48x640xbf16>, vector<16x640xf32> -> vector<16x640xf32>
    %c0_11 = arith.constant 0 : index
    %c0_12 = arith.constant 0 : index
    %30 = vector.load %arg6[%c0_11, %c0_12] : memref<16x1xf32, #tpu.memory_space<vmem>>, vector<16x1xf32>
    %31 = vector.broadcast %30 : vector<16x1xf32> to vector<16x640xf32>
    %32 = arith.addf %29, %31 : vector<16x640xf32>
    %cst_13 = arith.constant 0.000000e+00 : f32
    %33 = vector.broadcast %cst_13 : f32 to vector<16x640xf32>
    %34 = arith.maximumf %32, %33 : vector<16x640xf32>
    %c0_14 = arith.constant 0 : index
    %c0_15 = arith.constant 0 : index
    %35 = vector.load %arg7[%c0_14, %c0_15] : memref<16x8xbf16, #tpu.memory_space<vmem>>, vector<16x8xbf16>
    %36 = arith.truncf %2 : vector<8x640xf32> to vector<8x640xbf16>
    %cst_16 = arith.constant dense<0.000000e+00> : vector<16x640xf32>
    %37 = tpu.matmul %35, %36, %cst_16 {dimension_numbers = #tpu.dot_dimension_numbers<[1], [0], [0], [1], [0, 0, 1, 1], [], []>} : vector<16x8xbf16>, vector<8x640xbf16>, vector<16x640xf32> -> vector<16x640xf32>
    %c0_17 = arith.constant 0 : index
    %c0_18 = arith.constant 0 : index
    %38 = vector.load %arg8[%c0_17, %c0_18] : memref<16x1xf32, #tpu.memory_space<vmem>>, vector<16x1xf32>
    %39 = vector.broadcast %38 : vector<16x1xf32> to vector<16x640xf32>
    %40 = arith.addf %37, %39 : vector<16x640xf32>
    %41 = arith.addf %34, %40 : vector<16x640xf32>
    %cst_19 = arith.constant 0.000000e+00 : f32
    %42 = vector.broadcast %cst_19 : f32 to vector<16x640xf32>
    %43 = arith.maximumf %41, %42 : vector<16x640xf32>
    %44 = vector.broadcast %0 : vector<1x640xf32> to vector<16x640xf32>
    %45 = arith.mulf %43, %44 : vector<16x640xf32>
    %46 = vector.extract_strided_slice %45 {offsets = [0, 0], sizes = [16, 1], strides = [1, 1]} : vector<16x640xf32> to vector<16x1xf32>
    %47 = vector.extract_strided_slice %45 {offsets = [0, 0], sizes = [16, 639], strides = [1, 1]} : vector<16x640xf32> to vector<16x639xf32>
    %48 = tpu.concatenate %46, %47 in 1 : vector<16x1xf32>, vector<16x639xf32> -> vector<16x640xf32>
    %49 = vector.extract_strided_slice %45 {offsets = [0, 0], sizes = [16, 2], strides = [1, 1]} : vector<16x640xf32> to vector<16x2xf32>
    %50 = vector.extract_strided_slice %45 {offsets = [0, 0], sizes = [16, 638], strides = [1, 1]} : vector<16x640xf32> to vector<16x638xf32>
    %51 = tpu.concatenate %49, %50 in 1 : vector<16x2xf32>, vector<16x638xf32> -> vector<16x640xf32>
    %52 = tpu.concatenate %45, %48, %51 in 0 : vector<16x640xf32>, vector<16x640xf32>, vector<16x640xf32> -> vector<48x640xf32>
    %53 = arith.truncf %52 : vector<48x640xf32> to vector<48x640xbf16>
    %c0_20 = arith.constant 0 : index
    %c0_21 = arith.constant 0 : index
    %54 = vector.load %arg9[%c0_20, %c0_21] : memref<16x48xbf16, #tpu.memory_space<vmem>>, vector<16x48xbf16>
    %cst_22 = arith.constant dense<0.000000e+00> : vector<16x640xf32>
    %55 = tpu.matmul %54, %53, %cst_22 {dimension_numbers = #tpu.dot_dimension_numbers<[1], [0], [0], [1], [0, 0, 1, 1], [], []>} : vector<16x48xbf16>, vector<48x640xbf16>, vector<16x640xf32> -> vector<16x640xf32>
    %c0_23 = arith.constant 0 : index
    %c0_24 = arith.constant 0 : index
    %56 = vector.load %arg10[%c0_23, %c0_24] : memref<16x1xf32, #tpu.memory_space<vmem>>, vector<16x1xf32>
    %57 = vector.broadcast %56 : vector<16x1xf32> to vector<16x640xf32>
    %58 = arith.addf %55, %57 : vector<16x640xf32>
    %cst_25 = arith.constant 0.000000e+00 : f32
    %59 = vector.broadcast %cst_25 : f32 to vector<16x640xf32>
    %60 = arith.maximumf %58, %59 : vector<16x640xf32>
    %61 = vector.broadcast %0 : vector<1x640xf32> to vector<16x640xf32>
    %62 = arith.mulf %60, %61 : vector<16x640xf32>
    %63 = vector.extract_strided_slice %62 {offsets = [0, 0], sizes = [16, 1], strides = [1, 1]} : vector<16x640xf32> to vector<16x1xf32>
    %64 = vector.extract_strided_slice %62 {offsets = [0, 0], sizes = [16, 639], strides = [1, 1]} : vector<16x640xf32> to vector<16x639xf32>
    %65 = tpu.concatenate %63, %64 in 1 : vector<16x1xf32>, vector<16x639xf32> -> vector<16x640xf32>
    %66 = vector.extract_strided_slice %62 {offsets = [0, 0], sizes = [16, 2], strides = [1, 1]} : vector<16x640xf32> to vector<16x2xf32>
    %67 = vector.extract_strided_slice %62 {offsets = [0, 0], sizes = [16, 638], strides = [1, 1]} : vector<16x640xf32> to vector<16x638xf32>
    %68 = tpu.concatenate %66, %67 in 1 : vector<16x2xf32>, vector<16x638xf32> -> vector<16x640xf32>
    %69 = tpu.concatenate %62, %65, %68 in 0 : vector<16x640xf32>, vector<16x640xf32>, vector<16x640xf32> -> vector<48x640xf32>
    %70 = arith.truncf %69 : vector<48x640xf32> to vector<48x640xbf16>
    %c0_26 = arith.constant 0 : index
    %c0_27 = arith.constant 0 : index
    %71 = vector.load %arg11[%c0_26, %c0_27] : memref<16x48xbf16, #tpu.memory_space<vmem>>, vector<16x48xbf16>
    %cst_28 = arith.constant dense<0.000000e+00> : vector<16x640xf32>
    %72 = tpu.matmul %71, %70, %cst_28 {dimension_numbers = #tpu.dot_dimension_numbers<[1], [0], [0], [1], [0, 0, 1, 1], [], []>} : vector<16x48xbf16>, vector<48x640xbf16>, vector<16x640xf32> -> vector<16x640xf32>
    %c0_29 = arith.constant 0 : index
    %c0_30 = arith.constant 0 : index
    %73 = vector.load %arg12[%c0_29, %c0_30] : memref<16x1xf32, #tpu.memory_space<vmem>>, vector<16x1xf32>
    %74 = vector.broadcast %73 : vector<16x1xf32> to vector<16x640xf32>
    %75 = arith.addf %72, %74 : vector<16x640xf32>
    %cst_31 = arith.constant 0.000000e+00 : f32
    %76 = vector.broadcast %cst_31 : f32 to vector<16x640xf32>
    %77 = arith.maximumf %75, %76 : vector<16x640xf32>
    %78 = arith.addf %77, %45 : vector<16x640xf32>
    %cst_32 = arith.constant 0.000000e+00 : f32
    %79 = vector.broadcast %cst_32 : f32 to vector<16x640xf32>
    %80 = arith.maximumf %78, %79 : vector<16x640xf32>
    %81 = vector.broadcast %0 : vector<1x640xf32> to vector<16x640xf32>
    %82 = arith.mulf %80, %81 : vector<16x640xf32>
    %83 = vector.extract_strided_slice %82 {offsets = [0, 0], sizes = [16, 1], strides = [1, 1]} : vector<16x640xf32> to vector<16x1xf32>
    %84 = vector.extract_strided_slice %82 {offsets = [0, 0], sizes = [16, 639], strides = [1, 1]} : vector<16x640xf32> to vector<16x639xf32>
    %85 = tpu.concatenate %83, %84 in 1 : vector<16x1xf32>, vector<16x639xf32> -> vector<16x640xf32>
    %86 = vector.extract_strided_slice %82 {offsets = [0, 0], sizes = [16, 2], strides = [1, 1]} : vector<16x640xf32> to vector<16x2xf32>
    %87 = vector.extract_strided_slice %82 {offsets = [0, 0], sizes = [16, 638], strides = [1, 1]} : vector<16x640xf32> to vector<16x638xf32>
    %88 = tpu.concatenate %86, %87 in 1 : vector<16x2xf32>, vector<16x638xf32> -> vector<16x640xf32>
    %89 = tpu.concatenate %82, %85, %88 in 0 : vector<16x640xf32>, vector<16x640xf32>, vector<16x640xf32> -> vector<48x640xf32>
    %90 = arith.truncf %89 : vector<48x640xf32> to vector<48x640xbf16>
    %c0_33 = arith.constant 0 : index
    %c0_34 = arith.constant 0 : index
    %91 = vector.load %arg13[%c0_33, %c0_34] : memref<16x48xbf16, #tpu.memory_space<vmem>>, vector<16x48xbf16>
    %cst_35 = arith.constant dense<0.000000e+00> : vector<16x640xf32>
    %92 = tpu.matmul %91, %90, %cst_35 {dimension_numbers = #tpu.dot_dimension_numbers<[1], [0], [0], [1], [0, 0, 1, 1], [], []>} : vector<16x48xbf16>, vector<48x640xbf16>, vector<16x640xf32> -> vector<16x640xf32>
    %c0_36 = arith.constant 0 : index
    %c0_37 = arith.constant 0 : index
    %93 = vector.load %arg14[%c0_36, %c0_37] : memref<16x1xf32, #tpu.memory_space<vmem>>, vector<16x1xf32>
    %94 = vector.broadcast %93 : vector<16x1xf32> to vector<16x640xf32>
    %95 = arith.addf %92, %94 : vector<16x640xf32>
    %cst_38 = arith.constant 0.000000e+00 : f32
    %96 = vector.broadcast %cst_38 : f32 to vector<16x640xf32>
    %97 = arith.maximumf %95, %96 : vector<16x640xf32>
    %98 = vector.broadcast %0 : vector<1x640xf32> to vector<16x640xf32>
    %99 = arith.mulf %97, %98 : vector<16x640xf32>
    %100 = vector.extract_strided_slice %99 {offsets = [0, 0], sizes = [16, 1], strides = [1, 1]} : vector<16x640xf32> to vector<16x1xf32>
    %101 = vector.extract_strided_slice %99 {offsets = [0, 0], sizes = [16, 639], strides = [1, 1]} : vector<16x640xf32> to vector<16x639xf32>
    %102 = tpu.concatenate %100, %101 in 1 : vector<16x1xf32>, vector<16x639xf32> -> vector<16x640xf32>
    %103 = vector.extract_strided_slice %99 {offsets = [0, 0], sizes = [16, 2], strides = [1, 1]} : vector<16x640xf32> to vector<16x2xf32>
    %104 = vector.extract_strided_slice %99 {offsets = [0, 0], sizes = [16, 638], strides = [1, 1]} : vector<16x640xf32> to vector<16x638xf32>
    %105 = tpu.concatenate %103, %104 in 1 : vector<16x2xf32>, vector<16x638xf32> -> vector<16x640xf32>
    %106 = tpu.concatenate %99, %102, %105 in 0 : vector<16x640xf32>, vector<16x640xf32>, vector<16x640xf32> -> vector<48x640xf32>
    %107 = arith.truncf %106 : vector<48x640xf32> to vector<48x640xbf16>
    %c0_39 = arith.constant 0 : index
    %c0_40 = arith.constant 0 : index
    %108 = vector.load %arg15[%c0_39, %c0_40] : memref<16x48xbf16, #tpu.memory_space<vmem>>, vector<16x48xbf16>
    %cst_41 = arith.constant dense<0.000000e+00> : vector<16x640xf32>
    %109 = tpu.matmul %108, %107, %cst_41 {dimension_numbers = #tpu.dot_dimension_numbers<[1], [0], [0], [1], [0, 0, 1, 1], [], []>} : vector<16x48xbf16>, vector<48x640xbf16>, vector<16x640xf32> -> vector<16x640xf32>
    %c0_42 = arith.constant 0 : index
    %c0_43 = arith.constant 0 : index
    %110 = vector.load %arg16[%c0_42, %c0_43] : memref<16x1xf32, #tpu.memory_space<vmem>>, vector<16x1xf32>
    %111 = vector.broadcast %110 : vector<16x1xf32> to vector<16x640xf32>
    %112 = arith.addf %109, %111 : vector<16x640xf32>
    %cst_44 = arith.constant 0.000000e+00 : f32
    %113 = vector.broadcast %cst_44 : f32 to vector<16x640xf32>
    %114 = arith.maximumf %112, %113 : vector<16x640xf32>
    %115 = arith.addf %114, %82 : vector<16x640xf32>
    %cst_45 = arith.constant 0.000000e+00 : f32
    %116 = vector.broadcast %cst_45 : f32 to vector<16x640xf32>
    %117 = arith.maximumf %115, %116 : vector<16x640xf32>
    %118 = vector.broadcast %0 : vector<1x640xf32> to vector<16x640xf32>
    %119 = arith.mulf %117, %118 : vector<16x640xf32>
    %120 = arith.truncf %119 : vector<16x640xf32> to vector<16x640xbf16>
    %121 = vector.extract_strided_slice %120 {offsets = [0, 4], sizes = [16, 16], strides = [1, 1]} : vector<16x640xbf16> to vector<16x16xbf16>
    %c0_46 = arith.constant 0 : index
    %c0_47 = arith.constant 0 : index
    %c0_48 = arith.constant 0 : index
    %122 = vector.load %arg17[%c0_46, %c0_47, %c0_48] : memref<32x16x16xbf16, #tpu.memory_space<vmem>>, vector<1x16x16xbf16>
    %123 = vector.shape_cast %122 : vector<1x16x16xbf16> to vector<16x16xbf16>
    %124 = vector.shape_cast %121 : vector<16x16xbf16> to vector<1x16x16xbf16>
    tpu.vector_store %arg17[%c0_46, %c0_47, %c0_48], %124 {strides = array<i32>} : memref<32x16x16xbf16, #tpu.memory_space<vmem>>, vector<1x16x16xbf16>,
    %125 = vector.extract_strided_slice %120 {offsets = [0, 24], sizes = [16, 16], strides = [1, 1]} : vector<16x640xbf16> to vector<16x16xbf16>
    %c1 = arith.constant 1 : index
    %c0_49 = arith.constant 0 : index
    %c0_50 = arith.constant 0 : index
    %126 = vector.load %arg17[%c1, %c0_49, %c0_50] : memref<32x16x16xbf16, #tpu.memory_space<vmem>>, vector<1x16x16xbf16>
    %127 = vector.shape_cast %126 : vector<1x16x16xbf16> to vector<16x16xbf16>
    %128 = vector.shape_cast %125 : vector<16x16xbf16> to vector<1x16x16xbf16>
    tpu.vector_store %arg17[%c1, %c0_49, %c0_50], %128 {strides = array<i32>} : memref<32x16x16xbf16, #tpu.memory_space<vmem>>, vector<1x16x16xbf16>,
    %129 = vector.extract_strided_slice %120 {offsets = [0, 44], sizes = [16, 16], strides = [1, 1]} : vector<16x640xbf16> to vector<16x16xbf16>
    %c2 = arith.constant 2 : index
    %c0_51 = arith.constant 0 : index
    %c0_52 = arith.constant 0 : index
    %130 = vector.load %arg17[%c2, %c0_51, %c0_52] : memref<32x16x16xbf16, #tpu.memory_space<vmem>>, vector<1x16x16xbf16>
    %131 = vector.shape_cast %130 : vector<1x16x16xbf16> to vector<16x16xbf16>
    %132 = vector.shape_cast %129 : vector<16x16xbf16> to vector<1x16x16xbf16>
    tpu.vector_store %arg17[%c2, %c0_51, %c0_52], %132 {strides = array<i32>} : memref<32x16x16xbf16, #tpu.memory_space<vmem>>, vector<1x16x16xbf16>,
    %133 = vector.extract_strided_slice %120 {offsets = [0, 64], sizes = [16, 16], strides = [1, 1]} : vector<16x640xbf16> to vector<16x16xbf16>
    %c3 = arith.constant 3 : index
    %c0_53 = arith.constant 0 : index
    %c0_54 = arith.constant 0 : index
    %134 = vector.load %arg17[%c3, %c0_53, %c0_54] : memref<32x16x16xbf16, #tpu.memory_space<vmem>>, vector<1x16x16xbf16>
    %135 = vector.shape_cast %134 : vector<1x16x16xbf16> to vector<16x16xbf16>
    %136 = vector.shape_cast %133 : vector<16x16xbf16> to vector<1x16x16xbf16>
    tpu.vector_store %arg17[%c3, %c0_53, %c0_54], %136 {strides = array<i32>} : memref<32x16x16xbf16, #tpu.memory_space<vmem>>, vector<1x16x16xbf16>,
    %137 = vector.extract_strided_slice %120 {offsets = [0, 84], sizes = [16, 16], strides = [1, 1]} : vector<16x640xbf16> to vector<16x16xbf16>
    %c4 = arith.constant 4 : index
    %c0_55 = arith.constant 0 : index
    %c0_56 = arith.constant 0 : index
    %138 = vector.load %arg17[%c4, %c0_55, %c0_56] : memref<32x16x16xbf16, #tpu.memory_space<vmem>>, vector<1x16x16xbf16>
    %139 = vector.shape_cast %138 : vector<1x16x16xbf16> to vector<16x16xbf16>
    %140 = vector.shape_cast %137 : vector<16x16xbf16> to vector<1x16x16xbf16>
    tpu.vector_store %arg17[%c4, %c0_55, %c0_56], %140 {strides = array<i32>} : memref<32x16x16xbf16, #tpu.memory_space<vmem>>, vector<1x16x16xbf16>,
    %141 = vector.extract_strided_slice %120 {offsets = [0, 104], sizes = [16, 16], strides = [1, 1]} : vector<16x640xbf16> to vector<16x16xbf16>
    %c5 = arith.constant 5 : index
    %c0_57 = arith.constant 0 : index
    %c0_58 = arith.constant 0 : index
    %142 = vector.load %arg17[%c5, %c0_57, %c0_58] : memref<32x16x16xbf16, #tpu.memory_space<vmem>>, vector<1x16x16xbf16>
    %143 = vector.shape_cast %142 : vector<1x16x16xbf16> to vector<16x16xbf16>
    %144 = vector.shape_cast %141 : vector<16x16xbf16> to vector<1x16x16xbf16>
    tpu.vector_store %arg17[%c5, %c0_57, %c0_58], %144 {strides = array<i32>} : memref<32x16x16xbf16, #tpu.memory_space<vmem>>, vector<1x16x16xbf16>,
    %145 = vector.extract_strided_slice %120 {offsets = [0, 124], sizes = [16, 16], strides = [1, 1]} : vector<16x640xbf16> to vector<16x16xbf16>
    %c6 = arith.constant 6 : index
    %c0_59 = arith.constant 0 : index
    %c0_60 = arith.constant 0 : index
    %146 = vector.load %arg17[%c6, %c0_59, %c0_60] : memref<32x16x16xbf16, #tpu.memory_space<vmem>>, vector<1x16x16xbf16>
    %147 = vector.shape_cast %146 : vector<1x16x16xbf16> to vector<16x16xbf16>
    %148 = vector.shape_cast %145 : vector<16x16xbf16> to vector<1x16x16xbf16>
    tpu.vector_store %arg17[%c6, %c0_59, %c0_60], %148 {strides = array<i32>} : memref<32x16x16xbf16, #tpu.memory_space<vmem>>, vector<1x16x16xbf16>,
    %149 = vector.extract_strided_slice %120 {offsets = [0, 144], sizes = [16, 16], strides = [1, 1]} : vector<16x640xbf16> to vector<16x16xbf16>
    %c7 = arith.constant 7 : index
    %c0_61 = arith.constant 0 : index
    %c0_62 = arith.constant 0 : index
    %150 = vector.load %arg17[%c7, %c0_61, %c0_62] : memref<32x16x16xbf16, #tpu.memory_space<vmem>>, vector<1x16x16xbf16>
    %151 = vector.shape_cast %150 : vector<1x16x16xbf16> to vector<16x16xbf16>
    %152 = vector.shape_cast %149 : vector<16x16xbf16> to vector<1x16x16xbf16>
    tpu.vector_store %arg17[%c7, %c0_61, %c0_62], %152 {strides = array<i32>} : memref<32x16x16xbf16, #tpu.memory_space<vmem>>, vector<1x16x16xbf16>,
    %153 = vector.extract_strided_slice %120 {offsets = [0, 164], sizes = [16, 16], strides = [1, 1]} : vector<16x640xbf16> to vector<16x16xbf16>
    %c8 = arith.constant 8 : index
    %c0_63 = arith.constant 0 : index
    %c0_64 = arith.constant 0 : index
    %154 = vector.load %arg17[%c8, %c0_63, %c0_64] : memref<32x16x16xbf16, #tpu.memory_space<vmem>>, vector<1x16x16xbf16>
    %155 = vector.shape_cast %154 : vector<1x16x16xbf16> to vector<16x16xbf16>
    %156 = vector.shape_cast %153 : vector<16x16xbf16> to vector<1x16x16xbf16>
    tpu.vector_store %arg17[%c8, %c0_63, %c0_64], %156 {strides = array<i32>} : memref<32x16x16xbf16, #tpu.memory_space<vmem>>, vector<1x16x16xbf16>,
    %157 = vector.extract_strided_slice %120 {offsets = [0, 184], sizes = [16, 16], strides = [1, 1]} : vector<16x640xbf16> to vector<16x16xbf16>
    %c9 = arith.constant 9 : index
    %c0_65 = arith.constant 0 : index
    %c0_66 = arith.constant 0 : index
    %158 = vector.load %arg17[%c9, %c0_65, %c0_66] : memref<32x16x16xbf16, #tpu.memory_space<vmem>>, vector<1x16x16xbf16>
    %159 = vector.shape_cast %158 : vector<1x16x16xbf16> to vector<16x16xbf16>
    %160 = vector.shape_cast %157 : vector<16x16xbf16> to vector<1x16x16xbf16>
    tpu.vector_store %arg17[%c9, %c0_65, %c0_66], %160 {strides = array<i32>} : memref<32x16x16xbf16, #tpu.memory_space<vmem>>, vector<1x16x16xbf16>,
    %161 = vector.extract_strided_slice %120 {offsets = [0, 204], sizes = [16, 16], strides = [1, 1]} : vector<16x640xbf16> to vector<16x16xbf16>
    %c10 = arith.constant 10 : index
    %c0_67 = arith.constant 0 : index
    %c0_68 = arith.constant 0 : index
    %162 = vector.load %arg17[%c10, %c0_67, %c0_68] : memref<32x16x16xbf16, #tpu.memory_space<vmem>>, vector<1x16x16xbf16>
    %163 = vector.shape_cast %162 : vector<1x16x16xbf16> to vector<16x16xbf16>
    %164 = vector.shape_cast %161 : vector<16x16xbf16> to vector<1x16x16xbf16>
    tpu.vector_store %arg17[%c10, %c0_67, %c0_68], %164 {strides = array<i32>} : memref<32x16x16xbf16, #tpu.memory_space<vmem>>, vector<1x16x16xbf16>,
    %165 = vector.extract_strided_slice %120 {offsets = [0, 224], sizes = [16, 16], strides = [1, 1]} : vector<16x640xbf16> to vector<16x16xbf16>
    %c11 = arith.constant 11 : index
    %c0_69 = arith.constant 0 : index
    %c0_70 = arith.constant 0 : index
    %166 = vector.load %arg17[%c11, %c0_69, %c0_70] : memref<32x16x16xbf16, #tpu.memory_space<vmem>>, vector<1x16x16xbf16>
    %167 = vector.shape_cast %166 : vector<1x16x16xbf16> to vector<16x16xbf16>
    %168 = vector.shape_cast %165 : vector<16x16xbf16> to vector<1x16x16xbf16>
    tpu.vector_store %arg17[%c11, %c0_69, %c0_70], %168 {strides = array<i32>} : memref<32x16x16xbf16, #tpu.memory_space<vmem>>, vector<1x16x16xbf16>,
    %169 = vector.extract_strided_slice %120 {offsets = [0, 244], sizes = [16, 16], strides = [1, 1]} : vector<16x640xbf16> to vector<16x16xbf16>
    %c12 = arith.constant 12 : index
    %c0_71 = arith.constant 0 : index
    %c0_72 = arith.constant 0 : index
    %170 = vector.load %arg17[%c12, %c0_71, %c0_72] : memref<32x16x16xbf16, #tpu.memory_space<vmem>>, vector<1x16x16xbf16>
    %171 = vector.shape_cast %170 : vector<1x16x16xbf16> to vector<16x16xbf16>
    %172 = vector.shape_cast %169 : vector<16x16xbf16> to vector<1x16x16xbf16>
    tpu.vector_store %arg17[%c12, %c0_71, %c0_72], %172 {strides = array<i32>} : memref<32x16x16xbf16, #tpu.memory_space<vmem>>, vector<1x16x16xbf16>,
    %173 = vector.extract_strided_slice %120 {offsets = [0, 264], sizes = [16, 16], strides = [1, 1]} : vector<16x640xbf16> to vector<16x16xbf16>
    %c13 = arith.constant 13 : index
    %c0_73 = arith.constant 0 : index
    %c0_74 = arith.constant 0 : index
    %174 = vector.load %arg17[%c13, %c0_73, %c0_74] : memref<32x16x16xbf16, #tpu.memory_space<vmem>>, vector<1x16x16xbf16>
    %175 = vector.shape_cast %174 : vector<1x16x16xbf16> to vector<16x16xbf16>
    %176 = vector.shape_cast %173 : vector<16x16xbf16> to vector<1x16x16xbf16>
    tpu.vector_store %arg17[%c13, %c0_73, %c0_74], %176 {strides = array<i32>} : memref<32x16x16xbf16, #tpu.memory_space<vmem>>, vector<1x16x16xbf16>,
    %177 = vector.extract_strided_slice %120 {offsets = [0, 284], sizes = [16, 16], strides = [1, 1]} : vector<16x640xbf16> to vector<16x16xbf16>
    %c14 = arith.constant 14 : index
    %c0_75 = arith.constant 0 : index
    %c0_76 = arith.constant 0 : index
    %178 = vector.load %arg17[%c14, %c0_75, %c0_76] : memref<32x16x16xbf16, #tpu.memory_space<vmem>>, vector<1x16x16xbf16>
    %179 = vector.shape_cast %178 : vector<1x16x16xbf16> to vector<16x16xbf16>
    %180 = vector.shape_cast %177 : vector<16x16xbf16> to vector<1x16x16xbf16>
    tpu.vector_store %arg17[%c14, %c0_75, %c0_76], %180 {strides = array<i32>} : memref<32x16x16xbf16, #tpu.memory_space<vmem>>, vector<1x16x16xbf16>,
    %181 = vector.extract_strided_slice %120 {offsets = [0, 304], sizes = [16, 16], strides = [1, 1]} : vector<16x640xbf16> to vector<16x16xbf16>
    %c15 = arith.constant 15 : index
    %c0_77 = arith.constant 0 : index
    %c0_78 = arith.constant 0 : index
    %182 = vector.load %arg17[%c15, %c0_77, %c0_78] : memref<32x16x16xbf16, #tpu.memory_space<vmem>>, vector<1x16x16xbf16>
    %183 = vector.shape_cast %182 : vector<1x16x16xbf16> to vector<16x16xbf16>
    %184 = vector.shape_cast %181 : vector<16x16xbf16> to vector<1x16x16xbf16>
    tpu.vector_store %arg17[%c15, %c0_77, %c0_78], %184 {strides = array<i32>} : memref<32x16x16xbf16, #tpu.memory_space<vmem>>, vector<1x16x16xbf16>,
    %185 = vector.extract_strided_slice %120 {offsets = [0, 324], sizes = [16, 16], strides = [1, 1]} : vector<16x640xbf16> to vector<16x16xbf16>
    %c16 = arith.constant 16 : index
    %c0_79 = arith.constant 0 : index
    %c0_80 = arith.constant 0 : index
    %186 = vector.load %arg17[%c16, %c0_79, %c0_80] : memref<32x16x16xbf16, #tpu.memory_space<vmem>>, vector<1x16x16xbf16>
    %187 = vector.shape_cast %186 : vector<1x16x16xbf16> to vector<16x16xbf16>
    %188 = vector.shape_cast %185 : vector<16x16xbf16> to vector<1x16x16xbf16>
    tpu.vector_store %arg17[%c16, %c0_79, %c0_80], %188 {strides = array<i32>} : memref<32x16x16xbf16, #tpu.memory_space<vmem>>, vector<1x16x16xbf16>,
    %189 = vector.extract_strided_slice %120 {offsets = [0, 344], sizes = [16, 16], strides = [1, 1]} : vector<16x640xbf16> to vector<16x16xbf16>
    %c17 = arith.constant 17 : index
    %c0_81 = arith.constant 0 : index
    %c0_82 = arith.constant 0 : index
    %190 = vector.load %arg17[%c17, %c0_81, %c0_82] : memref<32x16x16xbf16, #tpu.memory_space<vmem>>, vector<1x16x16xbf16>
    %191 = vector.shape_cast %190 : vector<1x16x16xbf16> to vector<16x16xbf16>
    %192 = vector.shape_cast %189 : vector<16x16xbf16> to vector<1x16x16xbf16>
    tpu.vector_store %arg17[%c17, %c0_81, %c0_82], %192 {strides = array<i32>} : memref<32x16x16xbf16, #tpu.memory_space<vmem>>, vector<1x16x16xbf16>,
    %193 = vector.extract_strided_slice %120 {offsets = [0, 364], sizes = [16, 16], strides = [1, 1]} : vector<16x640xbf16> to vector<16x16xbf16>
    %c18 = arith.constant 18 : index
    %c0_83 = arith.constant 0 : index
    %c0_84 = arith.constant 0 : index
    %194 = vector.load %arg17[%c18, %c0_83, %c0_84] : memref<32x16x16xbf16, #tpu.memory_space<vmem>>, vector<1x16x16xbf16>
    %195 = vector.shape_cast %194 : vector<1x16x16xbf16> to vector<16x16xbf16>
    %196 = vector.shape_cast %193 : vector<16x16xbf16> to vector<1x16x16xbf16>
    tpu.vector_store %arg17[%c18, %c0_83, %c0_84], %196 {strides = array<i32>} : memref<32x16x16xbf16, #tpu.memory_space<vmem>>, vector<1x16x16xbf16>,
    %197 = vector.extract_strided_slice %120 {offsets = [0, 384], sizes = [16, 16], strides = [1, 1]} : vector<16x640xbf16> to vector<16x16xbf16>
    %c19 = arith.constant 19 : index
    %c0_85 = arith.constant 0 : index
    %c0_86 = arith.constant 0 : index
    %198 = vector.load %arg17[%c19, %c0_85, %c0_86] : memref<32x16x16xbf16, #tpu.memory_space<vmem>>, vector<1x16x16xbf16>
    %199 = vector.shape_cast %198 : vector<1x16x16xbf16> to vector<16x16xbf16>
    %200 = vector.shape_cast %197 : vector<16x16xbf16> to vector<1x16x16xbf16>
    tpu.vector_store %arg17[%c19, %c0_85, %c0_86], %200 {strides = array<i32>} : memref<32x16x16xbf16, #tpu.memory_space<vmem>>, vector<1x16x16xbf16>,
    %201 = vector.extract_strided_slice %120 {offsets = [0, 404], sizes = [16, 16], strides = [1, 1]} : vector<16x640xbf16> to vector<16x16xbf16>
    %c20 = arith.constant 20 : index
    %c0_87 = arith.constant 0 : index
    %c0_88 = arith.constant 0 : index
    %202 = vector.load %arg17[%c20, %c0_87, %c0_88] : memref<32x16x16xbf16, #tpu.memory_space<vmem>>, vector<1x16x16xbf16>
    %203 = vector.shape_cast %202 : vector<1x16x16xbf16> to vector<16x16xbf16>
    %204 = vector.shape_cast %201 : vector<16x16xbf16> to vector<1x16x16xbf16>
    tpu.vector_store %arg17[%c20, %c0_87, %c0_88], %204 {strides = array<i32>} : memref<32x16x16xbf16, #tpu.memory_space<vmem>>, vector<1x16x16xbf16>,
    %205 = vector.extract_strided_slice %120 {offsets = [0, 424], sizes = [16, 16], strides = [1, 1]} : vector<16x640xbf16> to vector<16x16xbf16>
    %c21 = arith.constant 21 : index
    %c0_89 = arith.constant 0 : index
    %c0_90 = arith.constant 0 : index
    %206 = vector.load %arg17[%c21, %c0_89, %c0_90] : memref<32x16x16xbf16, #tpu.memory_space<vmem>>, vector<1x16x16xbf16>
    %207 = vector.shape_cast %206 : vector<1x16x16xbf16> to vector<16x16xbf16>
    %208 = vector.shape_cast %205 : vector<16x16xbf16> to vector<1x16x16xbf16>
    tpu.vector_store %arg17[%c21, %c0_89, %c0_90], %208 {strides = array<i32>} : memref<32x16x16xbf16, #tpu.memory_space<vmem>>, vector<1x16x16xbf16>,
    %209 = vector.extract_strided_slice %120 {offsets = [0, 444], sizes = [16, 16], strides = [1, 1]} : vector<16x640xbf16> to vector<16x16xbf16>
    %c22 = arith.constant 22 : index
    %c0_91 = arith.constant 0 : index
    %c0_92 = arith.constant 0 : index
    %210 = vector.load %arg17[%c22, %c0_91, %c0_92] : memref<32x16x16xbf16, #tpu.memory_space<vmem>>, vector<1x16x16xbf16>
    %211 = vector.shape_cast %210 : vector<1x16x16xbf16> to vector<16x16xbf16>
    %212 = vector.shape_cast %209 : vector<16x16xbf16> to vector<1x16x16xbf16>
    tpu.vector_store %arg17[%c22, %c0_91, %c0_92], %212 {strides = array<i32>} : memref<32x16x16xbf16, #tpu.memory_space<vmem>>, vector<1x16x16xbf16>,
    %213 = vector.extract_strided_slice %120 {offsets = [0, 464], sizes = [16, 16], strides = [1, 1]} : vector<16x640xbf16> to vector<16x16xbf16>
    %c23 = arith.constant 23 : index
    %c0_93 = arith.constant 0 : index
    %c0_94 = arith.constant 0 : index
    %214 = vector.load %arg17[%c23, %c0_93, %c0_94] : memref<32x16x16xbf16, #tpu.memory_space<vmem>>, vector<1x16x16xbf16>
    %215 = vector.shape_cast %214 : vector<1x16x16xbf16> to vector<16x16xbf16>
    %216 = vector.shape_cast %213 : vector<16x16xbf16> to vector<1x16x16xbf16>
    tpu.vector_store %arg17[%c23, %c0_93, %c0_94], %216 {strides = array<i32>} : memref<32x16x16xbf16, #tpu.memory_space<vmem>>, vector<1x16x16xbf16>,
    %217 = vector.extract_strided_slice %120 {offsets = [0, 484], sizes = [16, 16], strides = [1, 1]} : vector<16x640xbf16> to vector<16x16xbf16>
    %c24 = arith.constant 24 : index
    %c0_95 = arith.constant 0 : index
    %c0_96 = arith.constant 0 : index
    %218 = vector.load %arg17[%c24, %c0_95, %c0_96] : memref<32x16x16xbf16, #tpu.memory_space<vmem>>, vector<1x16x16xbf16>
    %219 = vector.shape_cast %218 : vector<1x16x16xbf16> to vector<16x16xbf16>
    %220 = vector.shape_cast %217 : vector<16x16xbf16> to vector<1x16x16xbf16>
    tpu.vector_store %arg17[%c24, %c0_95, %c0_96], %220 {strides = array<i32>} : memref<32x16x16xbf16, #tpu.memory_space<vmem>>, vector<1x16x16xbf16>,
    %221 = vector.extract_strided_slice %120 {offsets = [0, 504], sizes = [16, 16], strides = [1, 1]} : vector<16x640xbf16> to vector<16x16xbf16>
    %c25 = arith.constant 25 : index
    %c0_97 = arith.constant 0 : index
    %c0_98 = arith.constant 0 : index
    %222 = vector.load %arg17[%c25, %c0_97, %c0_98] : memref<32x16x16xbf16, #tpu.memory_space<vmem>>, vector<1x16x16xbf16>
    %223 = vector.shape_cast %222 : vector<1x16x16xbf16> to vector<16x16xbf16>
    %224 = vector.shape_cast %221 : vector<16x16xbf16> to vector<1x16x16xbf16>
    tpu.vector_store %arg17[%c25, %c0_97, %c0_98], %224 {strides = array<i32>} : memref<32x16x16xbf16, #tpu.memory_space<vmem>>, vector<1x16x16xbf16>,
    %225 = vector.extract_strided_slice %120 {offsets = [0, 524], sizes = [16, 16], strides = [1, 1]} : vector<16x640xbf16> to vector<16x16xbf16>
    %c26 = arith.constant 26 : index
    %c0_99 = arith.constant 0 : index
    %c0_100 = arith.constant 0 : index
    %226 = vector.load %arg17[%c26, %c0_99, %c0_100] : memref<32x16x16xbf16, #tpu.memory_space<vmem>>, vector<1x16x16xbf16>
    %227 = vector.shape_cast %226 : vector<1x16x16xbf16> to vector<16x16xbf16>
    %228 = vector.shape_cast %225 : vector<16x16xbf16> to vector<1x16x16xbf16>
    tpu.vector_store %arg17[%c26, %c0_99, %c0_100], %228 {strides = array<i32>} : memref<32x16x16xbf16, #tpu.memory_space<vmem>>, vector<1x16x16xbf16>,
    %229 = vector.extract_strided_slice %120 {offsets = [0, 544], sizes = [16, 16], strides = [1, 1]} : vector<16x640xbf16> to vector<16x16xbf16>
    %c27 = arith.constant 27 : index
    %c0_101 = arith.constant 0 : index
    %c0_102 = arith.constant 0 : index
    %230 = vector.load %arg17[%c27, %c0_101, %c0_102] : memref<32x16x16xbf16, #tpu.memory_space<vmem>>, vector<1x16x16xbf16>
    %231 = vector.shape_cast %230 : vector<1x16x16xbf16> to vector<16x16xbf16>
    %232 = vector.shape_cast %229 : vector<16x16xbf16> to vector<1x16x16xbf16>
    tpu.vector_store %arg17[%c27, %c0_101, %c0_102], %232 {strides = array<i32>} : memref<32x16x16xbf16, #tpu.memory_space<vmem>>, vector<1x16x16xbf16>,
    %233 = vector.extract_strided_slice %120 {offsets = [0, 564], sizes = [16, 16], strides = [1, 1]} : vector<16x640xbf16> to vector<16x16xbf16>
    %c28 = arith.constant 28 : index
    %c0_103 = arith.constant 0 : index
    %c0_104 = arith.constant 0 : index
    %234 = vector.load %arg17[%c28, %c0_103, %c0_104] : memref<32x16x16xbf16, #tpu.memory_space<vmem>>, vector<1x16x16xbf16>
    %235 = vector.shape_cast %234 : vector<1x16x16xbf16> to vector<16x16xbf16>
    %236 = vector.shape_cast %233 : vector<16x16xbf16> to vector<1x16x16xbf16>
    tpu.vector_store %arg17[%c28, %c0_103, %c0_104], %236 {strides = array<i32>} : memref<32x16x16xbf16, #tpu.memory_space<vmem>>, vector<1x16x16xbf16>,
    %237 = vector.extract_strided_slice %120 {offsets = [0, 584], sizes = [16, 16], strides = [1, 1]} : vector<16x640xbf16> to vector<16x16xbf16>
    %c29 = arith.constant 29 : index
    %c0_105 = arith.constant 0 : index
    %c0_106 = arith.constant 0 : index
    %238 = vector.load %arg17[%c29, %c0_105, %c0_106] : memref<32x16x16xbf16, #tpu.memory_space<vmem>>, vector<1x16x16xbf16>
    %239 = vector.shape_cast %238 : vector<1x16x16xbf16> to vector<16x16xbf16>
    %240 = vector.shape_cast %237 : vector<16x16xbf16> to vector<1x16x16xbf16>
    tpu.vector_store %arg17[%c29, %c0_105, %c0_106], %240 {strides = array<i32>} : memref<32x16x16xbf16, #tpu.memory_space<vmem>>, vector<1x16x16xbf16>,
    %241 = vector.extract_strided_slice %120 {offsets = [0, 604], sizes = [16, 16], strides = [1, 1]} : vector<16x640xbf16> to vector<16x16xbf16>
    %c30 = arith.constant 30 : index
    %c0_107 = arith.constant 0 : index
    %c0_108 = arith.constant 0 : index
    %242 = vector.load %arg17[%c30, %c0_107, %c0_108] : memref<32x16x16xbf16, #tpu.memory_space<vmem>>, vector<1x16x16xbf16>
    %243 = vector.shape_cast %242 : vector<1x16x16xbf16> to vector<16x16xbf16>
    %244 = vector.shape_cast %241 : vector<16x16xbf16> to vector<1x16x16xbf16>
    tpu.vector_store %arg17[%c30, %c0_107, %c0_108], %244 {strides = array<i32>} : memref<32x16x16xbf16, #tpu.memory_space<vmem>>, vector<1x16x16xbf16>,
    %245 = vector.extract_strided_slice %120 {offsets = [0, 624], sizes = [16, 16], strides = [1, 1]} : vector<16x640xbf16> to vector<16x16xbf16>
    %c31 = arith.constant 31 : index
    %c0_109 = arith.constant 0 : index
    %c0_110 = arith.constant 0 : index
    %246 = vector.load %arg17[%c31, %c0_109, %c0_110] : memref<32x16x16xbf16, #tpu.memory_space<vmem>>, vector<1x16x16xbf16>
    %247 = vector.shape_cast %246 : vector<1x16x16xbf16> to vector<16x16xbf16>
    %248 = vector.shape_cast %245 : vector<16x16xbf16> to vector<1x16x16xbf16>
    tpu.vector_store %arg17[%c31, %c0_109, %c0_110], %248 {strides = array<i32>} : memref<32x16x16xbf16, #tpu.memory_space<vmem>>, vector<1x16x16xbf16>,
    return
  }
  func.func @transform_0(%arg0: i32) -> (i32, i32) {
    %c0_i32 = arith.constant 0 : i32
    %c0_i32_0 = arith.constant 0 : i32
    return %c0_i32, %arg0 : i32, i32
  }
  func.func @transform_1(%arg0: i32) -> (i32, i32) {
    %c0_i32 = arith.constant 0 : i32
    %c0_i32_0 = arith.constant 0 : i32
    %c0_i32_1 = arith.constant 0 : i32
    return %c0_i32, %c0_i32_0 : i32, i32
  }
  func.func @transform_2(%arg0: i32) -> (i32, i32) {
    %c0_i32 = arith.constant 0 : i32
    %c0_i32_0 = arith.constant 0 : i32
    %c0_i32_1 = arith.constant 0 : i32
    return %c0_i32, %c0_i32_0 : i32, i32
  }
  func.func @transform_3(%arg0: i32) -> (i32, i32) {
    %c0_i32 = arith.constant 0 : i32
    %c0_i32_0 = arith.constant 0 : i32
    %c0_i32_1 = arith.constant 0 : i32
    return %c0_i32, %c0_i32_0 : i32, i32
  }
  func.func @transform_4(%arg0: i32) -> (i32, i32) {
    %c0_i32 = arith.constant 0 : i32
    %c0_i32_0 = arith.constant 0 : i32
    %c0_i32_1 = arith.constant 0 : i32
    return %c0_i32, %c0_i32_0 : i32, i32
  }
  func.func @transform_5(%arg0: i32) -> (i32, i32) {
    %c0_i32 = arith.constant 0 : i32
    %c0_i32_0 = arith.constant 0 : i32
    %c0_i32_1 = arith.constant 0 : i32
    return %c0_i32, %c0_i32_0 : i32, i32
  }
  func.func @transform_6(%arg0: i32) -> (i32, i32) {
    %c0_i32 = arith.constant 0 : i32
    %c0_i32_0 = arith.constant 0 : i32
    %c0_i32_1 = arith.constant 0 : i32
    return %c0_i32, %c0_i32_0 : i32, i32
  }
  func.func @transform_7(%arg0: i32) -> (i32, i32) {
    %c0_i32 = arith.constant 0 : i32
    %c0_i32_0 = arith.constant 0 : i32
    %c0_i32_1 = arith.constant 0 : i32
    return %c0_i32, %c0_i32_0 : i32, i32
  }
  func.func @transform_8(%arg0: i32) -> (i32, i32) {
    %c0_i32 = arith.constant 0 : i32
    %c0_i32_0 = arith.constant 0 : i32
    %c0_i32_1 = arith.constant 0 : i32
    return %c0_i32, %c0_i32_0 : i32, i32
  }
  func.func @transform_9(%arg0: i32) -> (i32, i32) {
    %c0_i32 = arith.constant 0 : i32
    %c0_i32_0 = arith.constant 0 : i32
    %c0_i32_1 = arith.constant 0 : i32
    return %c0_i32, %c0_i32_0 : i32, i32
  }
  func.func @transform_10(%arg0: i32) -> (i32, i32) {
    %c0_i32 = arith.constant 0 : i32
    %c0_i32_0 = arith.constant 0 : i32
    %c0_i32_1 = arith.constant 0 : i32
    return %c0_i32, %c0_i32_0 : i32, i32
  }
  func.func @transform_11(%arg0: i32) -> (i32, i32) {
    %c0_i32 = arith.constant 0 : i32
    %c0_i32_0 = arith.constant 0 : i32
    %c0_i32_1 = arith.constant 0 : i32
    return %c0_i32, %c0_i32_0 : i32, i32
  }
  func.func @transform_12(%arg0: i32) -> (i32, i32) {
    %c0_i32 = arith.constant 0 : i32
    %c0_i32_0 = arith.constant 0 : i32
    %c0_i32_1 = arith.constant 0 : i32
    return %c0_i32, %c0_i32_0 : i32, i32
  }
  func.func @transform_13(%arg0: i32) -> (i32, i32) {
    %c0_i32 = arith.constant 0 : i32
    %c0_i32_0 = arith.constant 0 : i32
    %c0_i32_1 = arith.constant 0 : i32
    return %c0_i32, %c0_i32_0 : i32, i32
  }
  func.func @transform_14(%arg0: i32) -> (i32, i32) {
    %c0_i32 = arith.constant 0 : i32
    %c0_i32_0 = arith.constant 0 : i32
    %c0_i32_1 = arith.constant 0 : i32
    return %c0_i32, %c0_i32_0 : i32, i32
  }
  func.func @transform_15(%arg0: i32) -> (i32, i32) {
    %c0_i32 = arith.constant 0 : i32
    %c0_i32_0 = arith.constant 0 : i32
    %c0_i32_1 = arith.constant 0 : i32
    return %c0_i32, %c0_i32_0 : i32, i32
  }
  func.func @transform_16(%arg0: i32) -> (i32, i32, i32) {
    %c0_i32 = arith.constant 0 : i32
    %c0_i32_0 = arith.constant 0 : i32
    %c0_i32_1 = arith.constant 0 : i32
    return %arg0, %c0_i32, %c0_i32_0 : i32, i32, i32
  }
}

</mosaic_0001>

<llo_original>
// kernel: tpu_custom_call.1
$region0: #{tpu_custom_call.1}
  #allocation0 [shape = 'u32[]', space=smem, size = 0x4, offset = 0x4, fixed_abs, tag = 'smem constant byte address 0x4 - core index']
  #allocation1 [shape = 'u32[72,128]{1,0:T(1,128)}', space=vmem, size = 0x9000, scoped, tag = 'internal scratch']
  %s0 = inlined_call_operand.hbm [shape: bf16[8,1280], index: 0, kind: input, shape index: {}]
  %s1 = inlined_call_operand.vmem [shape: f32[1,640], index: 1, kind: input, shape index: {}]
  %s2 = inlined_call_operand.vmem [shape: bf16[16,24], index: 2, kind: input, shape index: {}]
  %s3 = inlined_call_operand.vmem [shape: f32[16,1], index: 3, kind: input, shape index: {}]
  %s4 = inlined_call_operand.vmem [shape: bf16[16,48], index: 4, kind: input, shape index: {}]
  %s5 = inlined_call_operand.vmem [shape: f32[16,1], index: 5, kind: input, shape index: {}]
  %s6 = inlined_call_operand.vmem [shape: bf16[16,8], index: 6, kind: input, shape index: {}]
  %s7 = inlined_call_operand.vmem [shape: f32[16,1], index: 7, kind: input, shape index: {}]
  %s8 = inlined_call_operand.vmem [shape: bf16[16,48], index: 8, kind: input, shape index: {}]
  %s9 = inlined_call_operand.vmem [shape: f32[16,1], index: 9, kind: input, shape index: {}]
  %s10 = inlined_call_operand.vmem [shape: bf16[16,48], index: 10, kind: input, shape index: {}]
  %s11 = inlined_call_operand.vmem [shape: f32[16,1], index: 11, kind: input, shape index: {}]
  %s12 = inlined_call_operand.vmem [shape: bf16[16,48], index: 12, kind: input, shape index: {}]
  %s13 = inlined_call_operand.vmem [shape: f32[16,1], index: 13, kind: input, shape index: {}]
  %s14 = inlined_call_operand.vmem [shape: bf16[16,48], index: 14, kind: input, shape index: {}]
  %s15 = inlined_call_operand.vmem [shape: f32[16,1], index: 15, kind: input, shape index: {}]
  %s16 = inlined_call_operand.vmem [shape: bf16[64,16,16], index: 16, kind: output, shape index: {}]
  %s17 = sld [smem:[#allocation0]]
  $region101: #{tpu_custom_call.1} parent=0
    _
  %s19 = ssub.s32 1, %s17
  %s20 = scalar_select 0, %s19, %s17
  $region1: #{tpu_custom_call.1} parent=0
    #allocation2 [shape = 'u8[20480]{0}', space=vmem, size = 0x5000, scoped, tag = 'input window, operand 0']
    #allocation3 [shape = 's32[2]{0}', space=sflag, size = 0x8, scoped, tag = 'scoped memory for tpu_custom_call.1']
    %21 = vsyncpa [#allocation3], 0
    %s22 = scalar_lea.sflag [#allocation3], 1
    %23 = vsyncpa %s22, 0
    loop: start=0, step=1, limit=4
    $region2: #{tpu_custom_call.1} parent=1 // loop_pre_header
      _
    $region3: #{tpu_custom_call.1} parent=1 // loop_header
      %s25 = sphi 0, %s29
      %p26 = scmp.ge.s32.totalorder %s25, 4
      %s35 = sphi 0, %s37
      %s38 = sphi 0, %s35
      %s39 = sphi 0, %s38
      %s55 = sphi 0, %s39
      %s59 = sphi 0, %s59
      %s61 = sphi 0, %s59
      %s62 = sphi 0, %s61
      %s76 = sphi 0, %s62
      %s80 = sphi 0, %s80
      %s82 = sphi 0, %s80
      %s83 = sphi 0, %s82
      %s97 = sphi 0, %s83
      %s101 = sphi 0, %s101
      %s103 = sphi 0, %s101
      %s104 = sphi 0, %s103
      %s118 = sphi 0, %s104
      %s122 = sphi 0, %s122
      %s124 = sphi 0, %s122
      %s125 = sphi 0, %s124
      %s139 = sphi 0, %s125
      %s143 = sphi 0, %s143
      %s145 = sphi 0, %s143
      %s146 = sphi 0, %s145
      %s160 = sphi 0, %s146
      %s164 = sphi 0, %s164
      %s166 = sphi 0, %s164
      %s167 = sphi 0, %s166
      %s181 = sphi 0, %s167
      %s185 = sphi 0, %s185
      %s187 = sphi 0, %s185
      %s188 = sphi 0, %s187
      %s202 = sphi 0, %s188
      %s206 = sphi 0, %s206
      %s208 = sphi 0, %s206
      %s209 = sphi 0, %s208
      %s223 = sphi 0, %s209
      %s227 = sphi 0, %s227
      %s229 = sphi 0, %s227
      %s230 = sphi 0, %s229
      %s244 = sphi 0, %s230
      %s248 = sphi 0, %s248
      %s250 = sphi 0, %s248
      %s251 = sphi 0, %s250
      %s265 = sphi 0, %s251
      %s269 = sphi 0, %s269
      %s271 = sphi 0, %s269
      %s272 = sphi 0, %s271
      %s286 = sphi 0, %s272
      %s290 = sphi 0, %s290
      %s292 = sphi 0, %s290
      %s293 = sphi 0, %s292
      %s307 = sphi 0, %s293
      %s311 = sphi 0, %s311
      %s313 = sphi 0, %s311
      %s314 = sphi 0, %s313
      %s328 = sphi 0, %s314
      %s332 = sphi 0, %s332
      %s334 = sphi 0, %s332
      %s335 = sphi 0, %s334
      %s349 = sphi 0, %s335
      %s353 = sphi 0, %s353
      %s355 = sphi 0, %s353
      %s356 = sphi 0, %s355
      %s370 = sphi 0, %s356
      %s376 = sphi 0, %s378
      %s379 = sphi 0, %s376
      %s380 = sphi 0, %s379
      %s396 = sphi 0, %s380
    $region4: #{tpu_custom_call.1} parent=1 // loop_header_branch
      %28 = sbr.rel (%p26) target = $region8
    $region5: #{tpu_custom_call.1} parent=1 // loop_body
      %s30 = ssub.s32 %s25, 1
      %s31 = ssub.s32 %s25, 2
      %s32 = sadd.s32 %s25, 1
      %s33 = ssub.s32 %s25, %s32
      %p34 = scmp.eq.s32.totalorder %s33, 0
      %s36 = sadd.s32 %s35, 1
      %s37 = scalar_select %p34, %s35, %s36
      %p40 = pneg %p34
      %p41 = scmp.eq.s32.totalorder %s25, 1
      %p42 = por %p40, %p41
      %p43 = scmp.ne.s32.totalorder %s35, %s38
      %p44 = scmp.eq.s32.totalorder %s25, 0
      %p45 = por %p43, %p44
      %p46 = scmp.ne.s32.totalorder %s35, %s38
      %p47 = scmp.eq.s32.totalorder %s30, 1
      %p48 = por %p46, %p47
      %p49 = scmp.ne.s32.totalorder %s38, %s39
      %p50 = scmp.eq.s32.totalorder %s30, 0
      %p51 = por %p49, %p50
      %p52 = scmp.ne.s32.totalorder %s38, %s39
      %p53 = scmp.eq.s32.totalorder %s31, 1
      %p54 = por %p52, %p53
      %p56 = scmp.ne.s32.totalorder %s39, %s55
      %p57 = scmp.eq.s32.totalorder %s31, 0
      %p58 = por %p56, %p57
      %s60 = sadd.s32 %s59, 1
      %p63 = scmp.eq.s32.totalorder %s25, 1
      %p64 = scmp.ne.s32.totalorder %s59, %s61
      %p65 = scmp.eq.s32.totalorder %s25, 0
      %p66 = por %p64, %p65
      %p67 = scmp.ne.s32.totalorder %s59, %s61
      %p68 = scmp.eq.s32.totalorder %s30, 1
      %p69 = por %p67, %p68
      %p70 = scmp.ne.s32.totalorder %s61, %s62
      %p71 = scmp.eq.s32.totalorder %s30, 0
      %p72 = por %p70, %p71
      %p73 = scmp.ne.s32.totalorder %s61, %s62
      %p74 = scmp.eq.s32.totalorder %s31, 1
      %p75 = por %p73, %p74
      %p77 = scmp.ne.s32.totalorder %s62, %s76
      %p78 = scmp.eq.s32.totalorder %s31, 0
      %p79 = por %p77, %p78
      %s81 = sadd.s32 %s80, 1
      %p84 = scmp.eq.s32.totalorder %s25, 1
      %p85 = scmp.ne.s32.totalorder %s80, %s82
      %p86 = scmp.eq.s32.totalorder %s25, 0
      %p87 = por %p85, %p86
      %p88 = scmp.ne.s32.totalorder %s80, %s82
      %p89 = scmp.eq.s32.totalorder %s30, 1
      %p90 = por %p88, %p89
      %p91 = scmp.ne.s32.totalorder %s82, %s83
      %p92 = scmp.eq.s32.totalorder %s30, 0
      %p93 = por %p91, %p92
      %p94 = scmp.ne.s32.totalorder %s82, %s83
      %p95 = scmp.eq.s32.totalorder %s31, 1
      %p96 = por %p94, %p95
      %p98 = scmp.ne.s32.totalorder %s83, %s97
      %p99 = scmp.eq.s32.totalorder %s31, 0
      %p100 = por %p98, %p99
      %s102 = sadd.s32 %s101, 1
      %p105 = scmp.eq.s32.totalorder %s25, 1
      %p106 = scmp.ne.s32.totalorder %s101, %s103
      %p107 = scmp.eq.s32.totalorder %s25, 0
      %p108 = por %p106, %p107
      %p109 = scmp.ne.s32.totalorder %s101, %s103
      %p110 = scmp.eq.s32.totalorder %s30, 1
      %p111 = por %p109, %p110
      %p112 = scmp.ne.s32.totalorder %s103, %s104
      %p113 = scmp.eq.s32.totalorder %s30, 0
      %p114 = por %p112, %p113
      %p115 = scmp.ne.s32.totalorder %s103, %s104
      %p116 = scmp.eq.s32.totalorder %s31, 1
      %p117 = por %p115, %p116
      %p119 = scmp.ne.s32.totalorder %s104, %s118
      %p120 = scmp.eq.s32.totalorder %s31, 0
      %p121 = por %p119, %p120
      %s123 = sadd.s32 %s122, 1
      %p126 = scmp.eq.s32.totalorder %s25, 1
      %p127 = scmp.ne.s32.totalorder %s122, %s124
      %p128 = scmp.eq.s32.totalorder %s25, 0
      %p129 = por %p127, %p128
      %p130 = scmp.ne.s32.totalorder %s122, %s124
      %p131 = scmp.eq.s32.totalorder %s30, 1
      %p132 = por %p130, %p131
      %p133 = scmp.ne.s32.totalorder %s124, %s125
      %p134 = scmp.eq.s32.totalorder %s30, 0
      %p135 = por %p133, %p134
      %p136 = scmp.ne.s32.totalorder %s124, %s125
      %p137 = scmp.eq.s32.totalorder %s31, 1
      %p138 = por %p136, %p137
      %p140 = scmp.ne.s32.totalorder %s125, %s139
      %p141 = scmp.eq.s32.totalorder %s31, 0
      %p142 = por %p140, %p141
      %s144 = sadd.s32 %s143, 1
      %p147 = scmp.eq.s32.totalorder %s25, 1
      %p148 = scmp.ne.s32.totalorder %s143, %s145
      %p149 = scmp.eq.s32.totalorder %s25, 0
      %p150 = por %p148, %p149
      %p151 = scmp.ne.s32.totalorder %s143, %s145
      %p152 = scmp.eq.s32.totalorder %s30, 1
      %p153 = por %p151, %p152
      %p154 = scmp.ne.s32.totalorder %s145, %s146
      %p155 = scmp.eq.s32.totalorder %s30, 0
      %p156 = por %p154, %p155
      %p157 = scmp.ne.s32.totalorder %s145, %s146
      %p158 = scmp.eq.s32.totalorder %s31, 1
      %p159 = por %p157, %p158
      %p161 = scmp.ne.s32.totalorder %s146, %s160
      %p162 = scmp.eq.s32.totalorder %s31, 0
      %p163 = por %p161, %p162
      %s165 = sadd.s32 %s164, 1
      %p168 = scmp.eq.s32.totalorder %s25, 1
      %p169 = scmp.ne.s32.totalorder %s164, %s166
      %p170 = scmp.eq.s32.totalorder %s25, 0
      %p171 = por %p169, %p170
      %p172 = scmp.ne.s32.totalorder %s164, %s166
      %p173 = scmp.eq.s32.totalorder %s30, 1
      %p174 = por %p172, %p173
      %p175 = scmp.ne.s32.totalorder %s166, %s167
      %p176 = scmp.eq.s32.totalorder %s30, 0
      %p177 = por %p175, %p176
      %p178 = scmp.ne.s32.totalorder %s166, %s167
      %p179 = scmp.eq.s32.totalorder %s31, 1
      %p180 = por %p178, %p179
      %p182 = scmp.ne.s32.totalorder %s167, %s181
      %p183 = scmp.eq.s32.totalorder %s31, 0
      %p184 = por %p182, %p183
      %s186 = sadd.s32 %s185, 1
      %p189 = scmp.eq.s32.totalorder %s25, 1
      %p190 = scmp.ne.s32.totalorder %s185, %s187
      %p191 = scmp.eq.s32.totalorder %s25, 0
      %p192 = por %p190, %p191
      %p193 = scmp.ne.s32.totalorder %s185, %s187
      %p194 = scmp.eq.s32.totalorder %s30, 1
      %p195 = por %p193, %p194
      %p196 = scmp.ne.s32.totalorder %s187, %s188
      %p197 = scmp.eq.s32.totalorder %s30, 0
      %p198 = por %p196, %p197
      %p199 = scmp.ne.s32.totalorder %s187, %s188
      %p200 = scmp.eq.s32.totalorder %s31, 1
      %p201 = por %p199, %p200
      %p203 = scmp.ne.s32.totalorder %s188, %s202
      %p204 = scmp.eq.s32.totalorder %s31, 0
      %p205 = por %p203, %p204
      %s207 = sadd.s32 %s206, 1
      %p210 = scmp.eq.s32.totalorder %s25, 1
      %p211 = scmp.ne.s32.totalorder %s206, %s208
      %p212 = scmp.eq.s32.totalorder %s25, 0
      %p213 = por %p211, %p212
      %p214 = scmp.ne.s32.totalorder %s206, %s208
      %p215 = scmp.eq.s32.totalorder %s30, 1
      %p216 = por %p214, %p215
      %p217 = scmp.ne.s32.totalorder %s208, %s209
      %p218 = scmp.eq.s32.totalorder %s30, 0
      %p219 = por %p217, %p218
      %p220 = scmp.ne.s32.totalorder %s208, %s209
      %p221 = scmp.eq.s32.totalorder %s31, 1
      %p222 = por %p220, %p221
      %p224 = scmp.ne.s32.totalorder %s209, %s223
      %p225 = scmp.eq.s32.totalorder %s31, 0
      %p226 = por %p224, %p225
      %s228 = sadd.s32 %s227, 1
      %p231 = scmp.eq.s32.totalorder %s25, 1
      %p232 = scmp.ne.s32.totalorder %s227, %s229
      %p233 = scmp.eq.s32.totalorder %s25, 0
      %p234 = por %p232, %p233
      %p235 = scmp.ne.s32.totalorder %s227, %s229
      %p236 = scmp.eq.s32.totalorder %s30, 1
      %p237 = por %p235, %p236
      %p238 = scmp.ne.s32.totalorder %s229, %s230
      %p239 = scmp.eq.s32.totalorder %s30, 0
      %p240 = por %p238, %p239
      %p241 = scmp.ne.s32.totalorder %s229, %s230
      %p242 = scmp.eq.s32.totalorder %s31, 1
      %p243 = por %p241, %p242
      %p245 = scmp.ne.s32.totalorder %s230, %s244
      %p246 = scmp.eq.s32.totalorder %s31, 0
      %p247 = por %p245, %p246
      %s249 = sadd.s32 %s248, 1
      %p252 = scmp.eq.s32.totalorder %s25, 1
      %p253 = scmp.ne.s32.totalorder %s248, %s250
      %p254 = scmp.eq.s32.totalorder %s25, 0
      %p255 = por %p253, %p254
      %p256 = scmp.ne.s32.totalorder %s248, %s250
      %p257 = scmp.eq.s32.totalorder %s30, 1
      %p258 = por %p256, %p257
      %p259 = scmp.ne.s32.totalorder %s250, %s251
      %p260 = scmp.eq.s32.totalorder %s30, 0
      %p261 = por %p259, %p260
      %p262 = scmp.ne.s32.totalorder %s250, %s251
      %p263 = scmp.eq.s32.totalorder %s31, 1
      %p264 = por %p262, %p263
      %p266 = scmp.ne.s32.totalorder %s251, %s265
      %p267 = scmp.eq.s32.totalorder %s31, 0
      %p268 = por %p266, %p267
      %s270 = sadd.s32 %s269, 1
      %p273 = scmp.eq.s32.totalorder %s25, 1
      %p274 = scmp.ne.s32.totalorder %s269, %s271
      %p275 = scmp.eq.s32.totalorder %s25, 0
      %p276 = por %p274, %p275
      %p277 = scmp.ne.s32.totalorder %s269, %s271
      %p278 = scmp.eq.s32.totalorder %s30, 1
      %p279 = por %p277, %p278
      %p280 = scmp.ne.s32.totalorder %s271, %s272
      %p281 = scmp.eq.s32.totalorder %s30, 0
      %p282 = por %p280, %p281
      %p283 = scmp.ne.s32.totalorder %s271, %s272
      %p284 = scmp.eq.s32.totalorder %s31, 1
      %p285 = por %p283, %p284
      %p287 = scmp.ne.s32.totalorder %s272, %s286
      %p288 = scmp.eq.s32.totalorder %s31, 0
      %p289 = por %p287, %p288
      %s291 = sadd.s32 %s290, 1
      %p294 = scmp.eq.s32.totalorder %s25, 1
      %p295 = scmp.ne.s32.totalorder %s290, %s292
      %p296 = scmp.eq.s32.totalorder %s25, 0
      %p297 = por %p295, %p296
      %p298 = scmp.ne.s32.totalorder %s290, %s292
      %p299 = scmp.eq.s32.totalorder %s30, 1
      %p300 = por %p298, %p299
      %p301 = scmp.ne.s32.totalorder %s292, %s293
      %p302 = scmp.eq.s32.totalorder %s30, 0
      %p303 = por %p301, %p302
      %p304 = scmp.ne.s32.totalorder %s292, %s293
      %p305 = scmp.eq.s32.totalorder %s31, 1
      %p306 = por %p304, %p305
      %p308 = scmp.ne.s32.totalorder %s293, %s307
      %p309 = scmp.eq.s32.totalorder %s31, 0
      %p310 = por %p308, %p309
      %s312 = sadd.s32 %s311, 1
      %p315 = scmp.eq.s32.totalorder %s25, 1
      %p316 = scmp.ne.s32.totalorder %s311, %s313
      %p317 = scmp.eq.s32.totalorder %s25, 0
      %p318 = por %p316, %p317
      %p319 = scmp.ne.s32.totalorder %s311, %s313
      %p320 = scmp.eq.s32.totalorder %s30, 1
      %p321 = por %p319, %p320
      %p322 = scmp.ne.s32.totalorder %s313, %s314
      %p323 = scmp.eq.s32.totalorder %s30, 0
      %p324 = por %p322, %p323
      %p325 = scmp.ne.s32.totalorder %s313, %s314
      %p326 = scmp.eq.s32.totalorder %s31, 1
      %p327 = por %p325, %p326
      %p329 = scmp.ne.s32.totalorder %s314, %s328
      %p330 = scmp.eq.s32.totalorder %s31, 0
      %p331 = por %p329, %p330
      %s333 = sadd.s32 %s332, 1
      %p336 = scmp.eq.s32.totalorder %s25, 1
      %p337 = scmp.ne.s32.totalorder %s332, %s334
      %p338 = scmp.eq.s32.totalorder %s25, 0
      %p339 = por %p337, %p338
      %p340 = scmp.ne.s32.totalorder %s332, %s334
      %p341 = scmp.eq.s32.totalorder %s30, 1
      %p342 = por %p340, %p341
      %p343 = scmp.ne.s32.totalorder %s334, %s335
      %p344 = scmp.eq.s32.totalorder %s30, 0
      %p345 = por %p343, %p344
      %p346 = scmp.ne.s32.totalorder %s334, %s335
      %p347 = scmp.eq.s32.totalorder %s31, 1
      %p348 = por %p346, %p347
      %p350 = scmp.ne.s32.totalorder %s335, %s349
      %p351 = scmp.eq.s32.totalorder %s31, 0
      %p352 = por %p350, %p351
      %s354 = sadd.s32 %s353, 1
      %p357 = scmp.eq.s32.totalorder %s25, 1
      %p358 = scmp.ne.s32.totalorder %s353, %s355
      %p359 = scmp.eq.s32.totalorder %s25, 0
      %p360 = por %p358, %p359
      %p361 = scmp.ne.s32.totalorder %s353, %s355
      %p362 = scmp.eq.s32.totalorder %s30, 1
      %p363 = por %p361, %p362
      %p364 = scmp.ne.s32.totalorder %s355, %s356
      %p365 = scmp.eq.s32.totalorder %s30, 0
      %p366 = por %p364, %p365
      %p367 = scmp.ne.s32.totalorder %s355, %s356
      %p368 = scmp.eq.s32.totalorder %s31, 1
      %p369 = por %p367, %p368
      %p371 = scmp.ne.s32.totalorder %s356, %s370
      %p372 = scmp.eq.s32.totalorder %s31, 0
      %p373 = por %p371, %p372
      %s374 = ssub.s32 %s25, %s32
      %p375 = scmp.eq.s32.totalorder %s374, 0
      %s377 = sadd.s32 %s376, 1
      %s378 = scalar_select %p375, %s376, %s377
      %p381 = pneg %p375
      %p382 = scmp.eq.s32.totalorder %s25, 1
      %p383 = por %p381, %p382
      %p384 = scmp.ne.s32.totalorder %s376, %s379
      %p385 = scmp.eq.s32.totalorder %s25, 0
      %p386 = por %p384, %p385
      %p387 = scmp.ne.s32.totalorder %s376, %s379
      %p388 = scmp.eq.s32.totalorder %s30, 1
      %p389 = por %p387, %p388
      %p390 = scmp.ne.s32.totalorder %s379, %s380
      %p391 = scmp.eq.s32.totalorder %s30, 0
      %p392 = por %p390, %p391
      %p393 = scmp.ne.s32.totalorder %s379, %s380
      %p394 = scmp.eq.s32.totalorder %s31, 1
      %p395 = por %p393, %p394
      %p397 = scmp.ne.s32.totalorder %s380, %s396
      %p398 = scmp.eq.s32.totalorder %s31, 0
      %p399 = por %p397, %p398
      %p400 = scmp.le.s32.totalorder 1, %s25
      %p401 = scmp.lt.s32.totalorder %s25, 3
      %p402 = pnand %p400, %p401
      %p403 = pneg %p402
      // Predicated region
      $region9: #{tpu_custom_call.1} parent=5 // pred_check
        _
      $region10: #{tpu_custom_call.1} parent=5 // pred_check_branch
        %405 = sbr.rel (%p402) target = $region12
      $region11: #{tpu_custom_call.1} parent=5 // pred_region
        %s406 = ssub.s32 %s25, 1
        // Predicated region
        $region13: #{tpu_custom_call.1} parent=11 // pred_check
          %p407 = pneg %p72
        $region14: #{tpu_custom_call.1} parent=11 // pred_check_branch
          %409 = sbr.rel (%p407) target = $region16
        $region15: #{tpu_custom_call.1} parent=11 // pred_region
          _
        $region16: #{tpu_custom_call.1} parent=11 // pred_fallthru
          _
        // Predicated region
        $region17: #{tpu_custom_call.1} parent=11 // pred_check
          %p410 = pneg %p93
        $region18: #{tpu_custom_call.1} parent=11 // pred_check_branch
          %412 = sbr.rel (%p410) target = $region20
        $region19: #{tpu_custom_call.1} parent=11 // pred_region
          _
        $region20: #{tpu_custom_call.1} parent=11 // pred_fallthru
          _
        // Predicated region
        $region21: #{tpu_custom_call.1} parent=11 // pred_check
          %p413 = pneg %p114
        $region22: #{tpu_custom_call.1} parent=11 // pred_check_branch
          %415 = sbr.rel (%p413) target = $region24
        $region23: #{tpu_custom_call.1} parent=11 // pred_region
          _
        $region24: #{tpu_custom_call.1} parent=11 // pred_fallthru
          _
        // Predicated region
        $region25: #{tpu_custom_call.1} parent=11 // pred_check
          %p416 = pneg %p135
        $region26: #{tpu_custom_call.1} parent=11 // pred_check_branch
          %418 = sbr.rel (%p416) target = $region28
        $region27: #{tpu_custom_call.1} parent=11 // pred_region
          _
        $region28: #{tpu_custom_call.1} parent=11 // pred_fallthru
          _
        // Predicated region
        $region29: #{tpu_custom_call.1} parent=11 // pred_check
          %p419 = pneg %p156
        $region30: #{tpu_custom_call.1} parent=11 // pred_check_branch
          %421 = sbr.rel (%p419) target = $region32
        $region31: #{tpu_custom_call.1} parent=11 // pred_region
          _
        $region32: #{tpu_custom_call.1} parent=11 // pred_fallthru
          _
        // Predicated region
        $region33: #{tpu_custom_call.1} parent=11 // pred_check
          %p422 = pneg %p177
        $region34: #{tpu_custom_call.1} parent=11 // pred_check_branch
          %424 = sbr.rel (%p422) target = $region36
        $region35: #{tpu_custom_call.1} parent=11 // pred_region
          _
        $region36: #{tpu_custom_call.1} parent=11 // pred_fallthru
          _
        // Predicated region
        $region37: #{tpu_custom_call.1} parent=11 // pred_check
          %p425 = pneg %p198
        $region38: #{tpu_custom_call.1} parent=11 // pred_check_branch
          %427 = sbr.rel (%p425) target = $region40
        $region39: #{tpu_custom_call.1} parent=11 // pred_region
          _
        $region40: #{tpu_custom_call.1} parent=11 // pred_fallthru
          _
        // Predicated region
        $region41: #{tpu_custom_call.1} parent=11 // pred_check
          %p428 = pneg %p219
        $region42: #{tpu_custom_call.1} parent=11 // pred_check_branch
          %430 = sbr.rel (%p428) target = $region44
        $region43: #{tpu_custom_call.1} parent=11 // pred_region
          _
        $region44: #{tpu_custom_call.1} parent=11 // pred_fallthru
          _
        // Predicated region
        $region45: #{tpu_custom_call.1} parent=11 // pred_check
          %p431 = pneg %p240
        $region46: #{tpu_custom_call.1} parent=11 // pred_check_branch
          %433 = sbr.rel (%p431) target = $region48
        $region47: #{tpu_custom_call.1} parent=11 // pred_region
          _
        $region48: #{tpu_custom_call.1} parent=11 // pred_fallthru
          _
        // Predicated region
        $region49: #{tpu_custom_call.1} parent=11 // pred_check
          %p434 = pneg %p261
        $region50: #{tpu_custom_call.1} parent=11 // pred_check_branch
          %436 = sbr.rel (%p434) target = $region52
        $region51: #{tpu_custom_call.1} parent=11 // pred_region
          _
        $region52: #{tpu_custom_call.1} parent=11 // pred_fallthru
          _
        // Predicated region
        $region53: #{tpu_custom_call.1} parent=11 // pred_check
          %p437 = pneg %p282
        $region54: #{tpu_custom_call.1} parent=11 // pred_check_branch
          %439 = sbr.rel (%p437) target = $region56
        $region55: #{tpu_custom_call.1} parent=11 // pred_region
          _
        $region56: #{tpu_custom_call.1} parent=11 // pred_fallthru
          _
        // Predicated region
        $region57: #{tpu_custom_call.1} parent=11 // pred_check
          %p440 = pneg %p303
        $region58: #{tpu_custom_call.1} parent=11 // pred_check_branch
          %442 = sbr.rel (%p440) target = $region60
        $region59: #{tpu_custom_call.1} parent=11 // pred_region
          _
        $region60: #{tpu_custom_call.1} parent=11 // pred_fallthru
          _
        // Predicated region
        $region61: #{tpu_custom_call.1} parent=11 // pred_check
          %p443 = pneg %p324
        $region62: #{tpu_custom_call.1} parent=11 // pred_check_branch
          %445 = sbr.rel (%p443) target = $region64
        $region63: #{tpu_custom_call.1} parent=11 // pred_region
          _
        $region64: #{tpu_custom_call.1} parent=11 // pred_fallthru
          _
        // Predicated region
        $region65: #{tpu_custom_call.1} parent=11 // pred_check
          %p446 = pneg %p345
        $region66: #{tpu_custom_call.1} parent=11 // pred_check_branch
          %448 = sbr.rel (%p446) target = $region68
        $region67: #{tpu_custom_call.1} parent=11 // pred_region
          _
        $region68: #{tpu_custom_call.1} parent=11 // pred_fallthru
          _
        // Predicated region
        $region69: #{tpu_custom_call.1} parent=11 // pred_check
          %p449 = pneg %p366
        $region70: #{tpu_custom_call.1} parent=11 // pred_check_branch
          %451 = sbr.rel (%p449) target = $region72
        $region71: #{tpu_custom_call.1} parent=11 // pred_region
          _
        $region72: #{tpu_custom_call.1} parent=11 // pred_fallthru
          _
      $region12: #{tpu_custom_call.1} parent=5 // pred_fallthru
        _
      %p452 = scmp.lt.s32.totalorder %s25, 2
      // Predicated region
      $region73: #{tpu_custom_call.1} parent=5 // pred_check
        %p453 = pneg %p452
      $region74: #{tpu_custom_call.1} parent=5 // pred_check_branch
        %455 = sbr.rel (%p453) target = $region76
      $region75: #{tpu_custom_call.1} parent=5 // pred_region
        // Predicated region
        $region77: #{tpu_custom_call.1} parent=75 // pred_check
          %p456 = pneg %p45
        $region78: #{tpu_custom_call.1} parent=75 // pred_check_branch
          %458 = sbr.rel (%p456) target = $region80
        $region79: #{tpu_custom_call.1} parent=75 // pred_region
          %s459 = sand.u32 %s35, 1
          %s460 = scalar_lea.sflag [#allocation3], %s459
          %s461 = sand.u32 %s35, 1
          %s462 = smul.addr %s461, 20
          %s463 = scalar_lea.vmem [#allocation2], %s462
          %s464 = smul.u32 5, %s25
          %466 = vsyncadd %s460, 0
          %s467 = smul.addr %s464, 4
          %s468 = scalar_lea.hbm %s0, %s467
          %s470 = sshll.u32 %s468, 4
          %s471 = int_to_ptr.hbm [resolvable:$true] %s470
          %s472 = sshll.u32 %s463, 4
          %s473 = int_to_ptr.vmem [resolvable:$true] %s472
          %475 = dma.hbm_to_vmem [thread:$0]  %s471, 320, %s473, %s460
        $region80: #{tpu_custom_call.1} parent=75 // pred_fallthru
          _
      $region76: #{tpu_custom_call.1} parent=5 // pred_fallthru
        _
      %p476 = scmp.le.s32.totalorder 1, %s25
      %p477 = scmp.lt.s32.totalorder %s25, 3
      %p478 = pnand %p476, %p477
      %p479 = pneg %p478
      // Predicated region
      $region81: #{tpu_custom_call.1} parent=5 // pred_check
        _
      $region82: #{tpu_custom_call.1} parent=5 // pred_check_branch
        %481 = sbr.rel (%p478) target = $region84
      $region83: #{tpu_custom_call.1} parent=5 // pred_region
        %s482 = ssub.s32 %s25, 1
        %s483 = sand.u32 %s38, 1
        %s484 = scalar_lea.sflag [#allocation3], %s483
        %s485 = sand.u32 %s38, 1
        %s486 = smul.addr %s485, 20
        %s487 = scalar_lea.vmem [#allocation2], %s486
        // Predicated region
        $region85: #{tpu_custom_call.1} parent=83 // pred_check
          %p488 = pneg %p51
        $region86: #{tpu_custom_call.1} parent=83 // pred_check_branch
          %490 = sbr.rel (%p488) target = $region88
        $region87: #{tpu_custom_call.1} parent=83 // pred_region
          %492 = dma.done %s484, 320
        $region88: #{tpu_custom_call.1} parent=83 // pred_fallthru
          _
        %s493 = sand.u32 %s38, 1
        %s494 = scalar_lea.sflag [#allocation3], %s493
        %s495 = sand.u32 %s38, 1
        %s496 = smul.addr %s495, 20
        %s497 = scalar_lea.vmem [#allocation2], %s496
        %p498 = pneg %p51
        %p499 = pneg %p48
        %p500 = pneg %p72
        %p501 = pneg %p69
        %p502 = pneg %p93
        %p503 = pneg %p90
        %p504 = pneg %p114
        %p505 = pneg %p111
        %p506 = pneg %p135
        %p507 = pneg %p132
        %p508 = pneg %p156
        %p509 = pneg %p153
        %p510 = pneg %p177
        %p511 = pneg %p174
        %p512 = pneg %p198
        %p513 = pneg %p195
        %p514 = pneg %p219
        %p515 = pneg %p216
        %p516 = pneg %p240
        %p517 = pneg %p237
        %p518 = pneg %p261
        %p519 = pneg %p258
        %p520 = pneg %p282
        %p521 = pneg %p279
        %p522 = pneg %p303
        %p523 = pneg %p300
        %p524 = pneg %p324
        %p525 = pneg %p321
        %p526 = pneg %p345
        %p527 = pneg %p342
        %p528 = pneg %p366
        %p529 = pneg %p363
        %p530 = pneg %p392
        %p531 = pneg %p389
        %s532 = smul.u32 32, %s30
        %p533 = scmp.lt.s32.totalorder %s532, 63
        %s534 = scalar_select %p533, %s532, 63
        %s535 = smul.addr %s534, 2
        %s536 = smul.addr %s535, 4
        %s537 = scalar_lea.vmem %s16, %s536
        %s538 = smul.u32 5, %s30
        %s539 = smul.u32 32, %s30
        %p540 = scmp.lt.s32.totalorder %s539, 63
        %s541 = scalar_select %p540, %s539, 63
        %s542 = smul.addr %s541, 2
        %s543 = smul.addr %s542, 4
        %s544 = scalar_lea.vmem %s16, %s543
        %s545 = smul.u32 32, %s30
        %v547 = vld [vmem:[%s1] sm:$0x1f]
        %v548 = vld [vmem:[%s487] sm:$0xff]
        %v549 = vld [vmem:[%s487 + $0x8] sm:$0xff]
        %v550 = vld [vmem:[%s487 + $0x10] sm:$0xf]
        %v551 = vunpack.c.l.bf16 %v548
        %v552 = vunpack.c.h.bf16 %v548
        %v553 = vunpack.c.l.bf16 %v549
        %v554 = vunpack.c.h.bf16 %v549
        %v555 = vunpack.c.l.bf16 %v550
        %561 = vrot.lane.b32.xlu0 %v551, 1
        %v562 = vpop.permute.xlu0 %561
        %563 = vrot.lane.b32.xlu0 %v552, 1
        %v564 = vpop.permute.xlu0 %563
        %565 = vrot.lane.b32.xlu0 %v553, 1
        %v566 = vpop.permute.xlu0 %565
        %567 = vrot.lane.b32.xlu0 %v554, 1
        %v568 = vpop.permute.xlu0 %567
        %569 = vrot.lane.b32.xlu0 %v555, 1
        %v570 = vpop.permute.xlu0 %569
        %vm571 = vcmask 7168
        %v572 = vsel %vm571, %v562, %v564
        %v573 = vsel %vm571, %v564, %v566
        %v574 = vsel %vm571, %v566, %v568
        %v575 = vsel %vm571, %v568, %v570
        %v581 = vsel %vm571, %v551, %v562
        %582 = vrot.lane.b32.xlu0 %v551, 2
        %v583 = vpop.permute.xlu0 %582
        %584 = vrot.lane.b32.xlu0 %v552, 2
        %v585 = vpop.permute.xlu0 %584
        %586 = vrot.lane.b32.xlu0 %v553, 2
        %v587 = vpop.permute.xlu0 %586
        %588 = vrot.lane.b32.xlu0 %v554, 2
        %v589 = vpop.permute.xlu0 %588
        %590 = vrot.lane.b32.xlu0 %v555, 2
        %v591 = vpop.permute.xlu0 %590
        %vm592 = vcmask 15360
        %v593 = vsel %vm592, %v583, %v585
        %v594 = vsel %vm592, %v585, %v587
        %v595 = vsel %vm592, %v587, %v589
        %v596 = vsel %vm592, %v589, %v591
        %v602 = vsel %vm592, %v551, %v583
        %v603 = vpack.c.bf16 %v581, %v551
        %v604 = vpack.c.bf16 %v572, %v552
        %v605 = vpack.c.bf16 %v573, %v553
        %v606 = vpack.c.bf16 %v574, %v554
        %v607 = vpack.c.bf16 %v575, %v555
        %v608 = vpack.c.bf16 %v602, %v602
        %v609 = vpack.c.bf16 %v593, %v593
        %v610 = vpack.c.bf16 %v594, %v594
        %v611 = vpack.c.bf16 %v595, %v595
        %v612 = vpack.c.bf16 %v596, %v596
        %v613 = vld [vmem:[%s2] sm:$0xf]
        %v614 = vld [vmem:[%s2 + $0x4] sm:$0xf]
        %v615 = vld [vmem:[%s3] sm:$0xff]
        %v616 = vld [vmem:[%s3 + $0x8] sm:$0xff]
        %618 = vset.pattern.permute.xlu0 0
        %619 = vperm.xlu0 %618, %v615
        %v620 = vpop.permute.xlu0 %619
        %623 = vset.pattern.permute.xlu0 0
        %624 = vperm.xlu0 %623, %v616
        %v625 = vpop.permute.xlu0 %624
        %v629 = vunpack.c.l.b16 %v613
        %v630 = vunpack.c.l.b16 %v614
        %v631 = vpack.c.b16 %v630, %v629
        %vm632 = vcmask 195584
        %v634 = vsel %vm632, %v631, 0
        %vm636 = vcmask 1043456
        %v638 = vsel %vm636, %v608, 0
        %v641 = vsel %vm636, %v609, 0
        %v644 = vsel %vm636, %v610, 0
        %v647 = vsel %vm636, %v611, 0
        %v650 = vsel %vm636, %v612, 0
        %652 = vmatpush.bf16.msra.mxu0 0
        %653 = vmatpush.bf16.msra.mxu0 0
        %654 = vmatpush.bf16.msra.mxu0 0
        %655 = vmatpush.bf16.msra.mxu0 0
        %656 = vmatpush.bf16.msra.mxu0 0
        %657 = vmatpush.bf16.msra.mxu0 0
        %658 = vmatpush.bf16.msra.mxu0 %v638
        %659 = vmatpush.bf16.msra.mxu0 %v603
        %660 = vmatmul.bf16.gmra.mxu0 %v634
        %v661 = vpop.f32.mrf.mxu0
        %v662 = vadd.f32 %v620, %v661
        %v663 = vpop.f32.mrf.mxu0
        %v664 = vadd.f32 %v625, %v663
        %665 = vdwg.mxu0
        %666 = vmatpush.bf16.msra.mxu0 0
        %667 = vmatpush.bf16.msra.mxu0 0
        %668 = vmatpush.bf16.msra.mxu0 0
        %669 = vmatpush.bf16.msra.mxu0 0
        %670 = vmatpush.bf16.msra.mxu0 0
        %671 = vmatpush.bf16.msra.mxu0 0
        %672 = vmatpush.bf16.msra.mxu0 %v641
        %673 = vmatpush.bf16.msra.mxu0 %v604
        %674 = vmatmul.bf16.gmra.mxu0 %v634
        %v675 = vpop.f32.mrf.mxu0
        %v676 = vadd.f32 %v620, %v675
        %v677 = vpop.f32.mrf.mxu0
        %v678 = vadd.f32 %v625, %v677
        %679 = vdwg.mxu0
        %680 = vmatpush.bf16.msra.mxu0 0
        %681 = vmatpush.bf16.msra.mxu0 0
        %682 = vmatpush.bf16.msra.mxu0 0
        %683 = vmatpush.bf16.msra.mxu0 0
        %684 = vmatpush.bf16.msra.mxu0 0
        %685 = vmatpush.bf16.msra.mxu0 0
        %686 = vmatpush.bf16.msra.mxu0 %v644
        %687 = vmatpush.bf16.msra.mxu0 %v605
        %688 = vmatmul.bf16.gmra.mxu0 %v634
        %v689 = vpop.f32.mrf.mxu0
        %v690 = vadd.f32 %v620, %v689
        %v691 = vpop.f32.mrf.mxu0
        %v692 = vadd.f32 %v625, %v691
        %693 = vdwg.mxu0
        %694 = vmatpush.bf16.msra.mxu0 0
        %695 = vmatpush.bf16.msra.mxu0 0
        %696 = vmatpush.bf16.msra.mxu0 0
        %697 = vmatpush.bf16.msra.mxu0 0
        %698 = vmatpush.bf16.msra.mxu0 0
        %699 = vmatpush.bf16.msra.mxu0 0
        %700 = vmatpush.bf16.msra.mxu0 %v647
        %701 = vmatpush.bf16.msra.mxu0 %v606
        %702 = vmatmul.bf16.gmra.mxu0 %v634
        %v703 = vpop.f32.mrf.mxu0
        %v704 = vadd.f32 %v620, %v703
        %v705 = vpop.f32.mrf.mxu0
        %v706 = vadd.f32 %v625, %v705
        %707 = vdwg.mxu0
        %708 = vmatpush.bf16.msra.mxu0 0
        %709 = vmatpush.bf16.msra.mxu0 0
        %710 = vmatpush.bf16.msra.mxu0 0
        %711 = vmatpush.bf16.msra.mxu0 0
        %712 = vmatpush.bf16.msra.mxu0 0
        %713 = vmatpush.bf16.msra.mxu0 0
        %714 = vmatpush.bf16.msra.mxu0 %v650
        %715 = vmatpush.bf16.msra.mxu0 %v607
        %716 = vmatmul.bf16.gmra.mxu0 %v634
        %v717 = vpop.f32.mrf.mxu0
        %v718 = vadd.f32 %v620, %v717
        %v719 = vpop.f32.mrf.mxu0
        %v720 = vadd.f32 %v625, %v719
        %721 = vdwg.mxu0
        %v722 = vmax.f32 %v662, 0.0
        %v723 = vmax.f32 %v676, 0.0
        %v724 = vmax.f32 %v690, 0.0
        %v725 = vmax.f32 %v704, 0.0
        %v726 = vmax.f32 %v718, 0.0
        %v727 = vmax.f32 %v664, 0.0
        %v728 = vmax.f32 %v678, 0.0
        %v729 = vmax.f32 %v692, 0.0
        %v730 = vmax.f32 %v706, 0.0
        %v731 = vmax.f32 %v720, 0.0
        %v733 = vperm.slane %v547, 0
        %v734 = vperm.slane %v547, 1
        %v735 = vperm.slane %v547, 2
        %v736 = vperm.slane %v547, 3
        %v737 = vperm.slane %v547, 4
        %v743 = vmul.f32 %v722, %v733
        %v744 = vmul.f32 %v723, %v734
        %v745 = vmul.f32 %v724, %v735
        %v746 = vmul.f32 %v725, %v736
        %v747 = vmul.f32 %v726, %v737
        %v748 = vmul.f32 %v727, %v733
        %v749 = vmul.f32 %v728, %v734
        %v750 = vmul.f32 %v729, %v735
        %v751 = vmul.f32 %v730, %v736
        %v752 = vmul.f32 %v731, %v737
        %763 = vrot.lane.b32.xlu0 %v743, 1
        %v764 = vpop.permute.xlu0 %763
        %765 = vrot.lane.b32.xlu0 %v744, 1
        %v766 = vpop.permute.xlu0 %765
        %767 = vrot.lane.b32.xlu0 %v745, 1
        %v768 = vpop.permute.xlu0 %767
        %769 = vrot.lane.b32.xlu0 %v746, 1
        %v770 = vpop.permute.xlu0 %769
        %771 = vrot.lane.b32.xlu0 %v747, 1
        %v772 = vpop.permute.xlu0 %771
        %773 = vrot.lane.b32.xlu0 %v748, 1
        %v774 = vpop.permute.xlu0 %773
        %775 = vrot.lane.b32.xlu0 %v749, 1
        %v776 = vpop.permute.xlu0 %775
        %777 = vrot.lane.b32.xlu0 %v750, 1
        %v778 = vpop.permute.xlu0 %777
        %779 = vrot.lane.b32.xlu0 %v751, 1
        %v780 = vpop.permute.xlu0 %779
        %781 = vrot.lane.b32.xlu0 %v752, 1
        %v782 = vpop.permute.xlu0 %781
        %v783 = vsel %vm571, %v764, %v766
        %v784 = vsel %vm571, %v766, %v768
        %v785 = vsel %vm571, %v768, %v770
        %v786 = vsel %vm571, %v770, %v772
        %v787 = vsel %vm571, %v774, %v776
        %v788 = vsel %vm571, %v776, %v778
        %v789 = vsel %vm571, %v778, %v780
        %v790 = vsel %vm571, %v780, %v782
        %v801 = vsel %vm571, %v743, %v764
        %v802 = vsel %vm571, %v748, %v774
        %803 = vrot.lane.b32.xlu0 %v743, 2
        %v804 = vpop.permute.xlu0 %803
        %805 = vrot.lane.b32.xlu0 %v744, 2
        %v806 = vpop.permute.xlu0 %805
        %807 = vrot.lane.b32.xlu0 %v745, 2
        %v808 = vpop.permute.xlu0 %807
        %809 = vrot.lane.b32.xlu0 %v746, 2
        %v810 = vpop.permute.xlu0 %809
        %811 = vrot.lane.b32.xlu0 %v747, 2
        %v812 = vpop.permute.xlu0 %811
        %813 = vrot.lane.b32.xlu0 %v748, 2
        %v814 = vpop.permute.xlu0 %813
        %815 = vrot.lane.b32.xlu0 %v749, 2
        %v816 = vpop.permute.xlu0 %815
        %817 = vrot.lane.b32.xlu0 %v750, 2
        %v818 = vpop.permute.xlu0 %817
        %819 = vrot.lane.b32.xlu0 %v751, 2
        %v820 = vpop.permute.xlu0 %819
        %821 = vrot.lane.b32.xlu0 %v752, 2
        %v822 = vpop.permute.xlu0 %821
        %v823 = vsel %vm592, %v804, %v806
        %v824 = vsel %vm592, %v806, %v808
        %v825 = vsel %vm592, %v808, %v810
        %v826 = vsel %vm592, %v810, %v812
        %v827 = vsel %vm592, %v814, %v816
        %v828 = vsel %vm592, %v816, %v818
        %v829 = vsel %vm592, %v818, %v820
        %v830 = vsel %vm592, %v820, %v822
        %v841 = vsel %vm592, %v743, %v804
        %v842 = vsel %vm592, %v748, %v814
        %v843 = vpack.c.bf16 %v748, %v743
        %v844 = vpack.c.bf16 %v749, %v744
        %v845 = vpack.c.bf16 %v750, %v745
        %v846 = vpack.c.bf16 %v751, %v746
        %v847 = vpack.c.bf16 %v752, %v747
        %v848 = vpack.c.bf16 %v802, %v801
        %v849 = vpack.c.bf16 %v787, %v783
        %v850 = vpack.c.bf16 %v788, %v784
        %v851 = vpack.c.bf16 %v789, %v785
        %v852 = vpack.c.bf16 %v790, %v786
        %v853 = vpack.c.bf16 %v842, %v841
        %v854 = vpack.c.bf16 %v827, %v823
        %v855 = vpack.c.bf16 %v828, %v824
        %v856 = vpack.c.bf16 %v829, %v825
        %v857 = vpack.c.bf16 %v830, %v826
        %v858 = vld [vmem:[%s4] sm:$0xf]
        %v859 = vld [vmem:[%s4 + $0x4] sm:$0xf]
        %v860 = vld [vmem:[%s5] sm:$0xff]
        %v861 = vld [vmem:[%s5 + $0x8] sm:$0xff]
        %863 = vset.pattern.permute.xlu0 0
        %864 = vperm.xlu0 %863, %v860
        %v865 = vpop.permute.xlu0 %864
        %868 = vset.pattern.permute.xlu0 0
        %869 = vperm.xlu0 %868, %v861
        %v870 = vpop.permute.xlu0 %869
        %v874 = vunpack.c.l.b16 %v858
        %v875 = vunpack.c.l.b16 %v859
        %v876 = vpack.c.b16 %v875, %v874
        %vm877 = vcmask 392192
        %v879 = vsel %vm877, %v876, 0
        %881 = vmatpush.bf16.msra.mxu0 0
        %882 = vmatpush.bf16.msra.mxu0 0
        %883 = vmatpush.bf16.msra.mxu0 0
        %884 = vmatpush.bf16.msra.mxu0 0
        %885 = vmatpush.bf16.msra.mxu0 0
        %886 = vmatpush.bf16.msra.mxu0 %v853
        %887 = vmatpush.bf16.msra.mxu0 %v848
        %888 = vmatpush.bf16.msra.mxu0 %v843
        %889 = vmatmul.bf16.gmra.mxu0 %v879
        %v890 = vpop.f32.mrf.mxu0
        %v891 = vadd.f32 %v865, %v890
        %v892 = vpop.f32.mrf.mxu0
        %v893 = vadd.f32 %v870, %v892
        %894 = vdwg.mxu0
        %895 = vmatpush.bf16.msra.mxu0 0
        %896 = vmatpush.bf16.msra.mxu0 0
        %897 = vmatpush.bf16.msra.mxu0 0
        %898 = vmatpush.bf16.msra.mxu0 0
        %899 = vmatpush.bf16.msra.mxu0 0
        %900 = vmatpush.bf16.msra.mxu0 %v854
        %901 = vmatpush.bf16.msra.mxu0 %v849
        %902 = vmatpush.bf16.msra.mxu0 %v844
        %903 = vmatmul.bf16.gmra.mxu0 %v879
        %v904 = vpop.f32.mrf.mxu0
        %v905 = vadd.f32 %v865, %v904
        %v906 = vpop.f32.mrf.mxu0
        %v907 = vadd.f32 %v870, %v906
        %908 = vdwg.mxu0
        %909 = vmatpush.bf16.msra.mxu0 0
        %910 = vmatpush.bf16.msra.mxu0 0
        %911 = vmatpush.bf16.msra.mxu0 0
        %912 = vmatpush.bf16.msra.mxu0 0
        %913 = vmatpush.bf16.msra.mxu0 0
        %914 = vmatpush.bf16.msra.mxu0 %v855
        %915 = vmatpush.bf16.msra.mxu0 %v850
        %916 = vmatpush.bf16.msra.mxu0 %v845
        %917 = vmatmul.bf16.gmra.mxu0 %v879
        %v918 = vpop.f32.mrf.mxu0
        %v919 = vadd.f32 %v865, %v918
        %v920 = vpop.f32.mrf.mxu0
        %v921 = vadd.f32 %v870, %v920
        %922 = vdwg.mxu0
        %923 = vmatpush.bf16.msra.mxu0 0
        %924 = vmatpush.bf16.msra.mxu0 0
        %925 = vmatpush.bf16.msra.mxu0 0
        %926 = vmatpush.bf16.msra.mxu0 0
        %927 = vmatpush.bf16.msra.mxu0 0
        %928 = vmatpush.bf16.msra.mxu0 %v856
        %929 = vmatpush.bf16.msra.mxu0 %v851
        %930 = vmatpush.bf16.msra.mxu0 %v846
        %931 = vmatmul.bf16.gmra.mxu0 %v879
        %v932 = vpop.f32.mrf.mxu0
        %v933 = vadd.f32 %v865, %v932
        %v934 = vpop.f32.mrf.mxu0
        %v935 = vadd.f32 %v870, %v934
        %936 = vdwg.mxu0
        %937 = vmatpush.bf16.msra.mxu0 0
        %938 = vmatpush.bf16.msra.mxu0 0
        %939 = vmatpush.bf16.msra.mxu0 0
        %940 = vmatpush.bf16.msra.mxu0 0
        %941 = vmatpush.bf16.msra.mxu0 0
        %942 = vmatpush.bf16.msra.mxu0 %v857
        %943 = vmatpush.bf16.msra.mxu0 %v852
        %944 = vmatpush.bf16.msra.mxu0 %v847
        %945 = vmatmul.bf16.gmra.mxu0 %v879
        %v946 = vpop.f32.mrf.mxu0
        %v947 = vadd.f32 %v865, %v946
        %v948 = vpop.f32.mrf.mxu0
        %v949 = vadd.f32 %v870, %v948
        %950 = vdwg.mxu0
        %v951 = vmax.f32 %v891, 0.0
        %v952 = vmax.f32 %v905, 0.0
        %v953 = vmax.f32 %v919, 0.0
        %v954 = vmax.f32 %v933, 0.0
        %v955 = vmax.f32 %v947, 0.0
        %v956 = vmax.f32 %v893, 0.0
        %v957 = vmax.f32 %v907, 0.0
        %v958 = vmax.f32 %v921, 0.0
        %v959 = vmax.f32 %v935, 0.0
        %v960 = vmax.f32 %v949, 0.0
        %v961 = vld [vmem:[%s6] sm:$0xf]
        %v962 = vld [vmem:[%s6 + $0x4] sm:$0xf]
        %v963 = vld [vmem:[%s7] sm:$0xff]
        %v964 = vld [vmem:[%s7 + $0x8] sm:$0xff]
        %966 = vset.pattern.permute.xlu0 0
        %967 = vperm.xlu0 %966, %v963
        %v968 = vpop.permute.xlu0 %967
        %971 = vset.pattern.permute.xlu0 0
        %972 = vperm.xlu0 %971, %v964
        %v973 = vpop.permute.xlu0 %972
        %v977 = vunpack.c.l.b16 %v961
        %v978 = vunpack.c.l.b16 %v962
        %v979 = vpack.c.b16 %v978, %v977
        %v983 = vunpack.c.l.b16 %v548
        %v984 = vunpack.c.h.b16 %v548
        %v985 = vunpack.c.l.b16 %v549
        %v986 = vunpack.c.h.b16 %v549
        %v987 = vunpack.c.l.b16 %v550
        %v988 = vpack.c.b16 %v983, %v983
        %v989 = vpack.c.b16 %v984, %v984
        %v990 = vpack.c.b16 %v985, %v985
        %v991 = vpack.c.b16 %v986, %v986
        %v992 = vpack.c.b16 %v987, %v987
        %vm993 = vcmask 64512
        %v995 = vsel %vm993, %v979, 0
        %v998 = vsel %vm636, %v988, 0
        %v1001 = vsel %vm636, %v989, 0
        %v1004 = vsel %vm636, %v990, 0
        %v1007 = vsel %vm636, %v991, 0
        %v1010 = vsel %vm636, %v992, 0
        %1012 = vmatpush.bf16.msra.mxu0 0
        %1013 = vmatpush.bf16.msra.mxu0 0
        %1014 = vmatpush.bf16.msra.mxu0 0
        %1015 = vmatpush.bf16.msra.mxu0 0
        %1016 = vmatpush.bf16.msra.mxu0 0
        %1017 = vmatpush.bf16.msra.mxu0 0
        %1018 = vmatpush.bf16.msra.mxu0 0
        %1019 = vmatpush.bf16.msra.mxu0 %v998
        %1020 = vmatmul.bf16.gmra.mxu0 %v995
        %v1021 = vpop.f32.mrf.mxu0
        %v1022 = vadd.f32 %v968, %v1021
        %v1023 = vpop.f32.mrf.mxu0
        %v1024 = vadd.f32 %v973, %v1023
        %1025 = vdwg.mxu0
        %1026 = vmatpush.bf16.msra.mxu0 0
        %1027 = vmatpush.bf16.msra.mxu0 0
        %1028 = vmatpush.bf16.msra.mxu0 0
        %1029 = vmatpush.bf16.msra.mxu0 0
        %1030 = vmatpush.bf16.msra.mxu0 0
        %1031 = vmatpush.bf16.msra.mxu0 0
        %1032 = vmatpush.bf16.msra.mxu0 0
        %1033 = vmatpush.bf16.msra.mxu0 %v1001
        %1034 = vmatmul.bf16.gmra.mxu0 %v995
        %v1035 = vpop.f32.mrf.mxu0
        %v1036 = vadd.f32 %v968, %v1035
        %v1037 = vpop.f32.mrf.mxu0
        %v1038 = vadd.f32 %v973, %v1037
        %1039 = vdwg.mxu0
        %1040 = vmatpush.bf16.msra.mxu0 0
        %1041 = vmatpush.bf16.msra.mxu0 0
        %1042 = vmatpush.bf16.msra.mxu0 0
        %1043 = vmatpush.bf16.msra.mxu0 0
        %1044 = vmatpush.bf16.msra.mxu0 0
        %1045 = vmatpush.bf16.msra.mxu0 0
        %1046 = vmatpush.bf16.msra.mxu0 0
        %1047 = vmatpush.bf16.msra.mxu0 %v1004
        %1048 = vmatmul.bf16.gmra.mxu0 %v995
        %v1049 = vpop.f32.mrf.mxu0
        %v1050 = vadd.f32 %v968, %v1049
        %v1051 = vpop.f32.mrf.mxu0
        %v1052 = vadd.f32 %v973, %v1051
        %1053 = vdwg.mxu0
        %1054 = vmatpush.bf16.msra.mxu0 0
        %1055 = vmatpush.bf16.msra.mxu0 0
        %1056 = vmatpush.bf16.msra.mxu0 0
        %1057 = vmatpush.bf16.msra.mxu0 0
        %1058 = vmatpush.bf16.msra.mxu0 0
        %1059 = vmatpush.bf16.msra.mxu0 0
        %1060 = vmatpush.bf16.msra.mxu0 0
        %1061 = vmatpush.bf16.msra.mxu0 %v1007
        %1062 = vmatmul.bf16.gmra.mxu0 %v995
        %v1063 = vpop.f32.mrf.mxu0
        %v1064 = vadd.f32 %v968, %v1063
        %v1065 = vpop.f32.mrf.mxu0
        %v1066 = vadd.f32 %v973, %v1065
        %1067 = vdwg.mxu0
        %1068 = vmatpush.bf16.msra.mxu0 0
        %1069 = vmatpush.bf16.msra.mxu0 0
        %1070 = vmatpush.bf16.msra.mxu0 0
        %1071 = vmatpush.bf16.msra.mxu0 0
        %1072 = vmatpush.bf16.msra.mxu0 0
        %1073 = vmatpush.bf16.msra.mxu0 0
        %1074 = vmatpush.bf16.msra.mxu0 0
        %1075 = vmatpush.bf16.msra.mxu0 %v1010
        %1076 = vmatmul.bf16.gmra.mxu0 %v995
        %v1077 = vpop.f32.mrf.mxu0
        %v1078 = vadd.f32 %v968, %v1077
        %v1079 = vpop.f32.mrf.mxu0
        %v1080 = vadd.f32 %v973, %v1079
        %1081 = vdwg.mxu0
        %v1082 = vadd.f32 %v951, %v1022
        %v1083 = vadd.f32 %v952, %v1036
        %v1084 = vadd.f32 %v953, %v1050
        %v1085 = vadd.f32 %v954, %v1064
        %v1086 = vadd.f32 %v955, %v1078
        %v1087 = vadd.f32 %v956, %v1024
        %v1088 = vadd.f32 %v957, %v1038
        %v1089 = vadd.f32 %v958, %v1052
        %v1090 = vadd.f32 %v959, %v1066
        %v1091 = vadd.f32 %v960, %v1080
        %v1092 = vmax.f32 %v1082, 0.0
        %v1093 = vmax.f32 %v1083, 0.0
        %v1094 = vmax.f32 %v1084, 0.0
        %v1095 = vmax.f32 %v1085, 0.0
        %v1096 = vmax.f32 %v1086, 0.0
        %v1097 = vmax.f32 %v1087, 0.0
        %v1098 = vmax.f32 %v1088, 0.0
        %v1099 = vmax.f32 %v1089, 0.0
        %v1100 = vmax.f32 %v1090, 0.0
        %v1101 = vmax.f32 %v1091, 0.0
        %v1102 = vmul.f32 %v1092, %v733
        %v1103 = vmul.f32 %v1093, %v734
        %v1104 = vmul.f32 %v1094, %v735
        %v1105 = vmul.f32 %v1095, %v736
        %v1106 = vmul.f32 %v1096, %v737
        %v1107 = vmul.f32 %v1097, %v733
        %v1108 = vmul.f32 %v1098, %v734
        %v1109 = vmul.f32 %v1099, %v735
        %v1110 = vmul.f32 %v1100, %v736
        %v1111 = vmul.f32 %v1101, %v737
        %1122 = vrot.lane.b32.xlu0 %v1102, 1
        %v1123 = vpop.permute.xlu0 %1122
        %1124 = vrot.lane.b32.xlu0 %v1103, 1
        %v1125 = vpop.permute.xlu0 %1124
        %1126 = vrot.lane.b32.xlu0 %v1104, 1
        %v1127 = vpop.permute.xlu0 %1126
        %1128 = vrot.lane.b32.xlu0 %v1105, 1
        %v1129 = vpop.permute.xlu0 %1128
        %1130 = vrot.lane.b32.xlu0 %v1106, 1
        %v1131 = vpop.permute.xlu0 %1130
        %1132 = vrot.lane.b32.xlu0 %v1107, 1
        %v1133 = vpop.permute.xlu0 %1132
        %1134 = vrot.lane.b32.xlu0 %v1108, 1
        %v1135 = vpop.permute.xlu0 %1134
        %1136 = vrot.lane.b32.xlu0 %v1109, 1
        %v1137 = vpop.permute.xlu0 %1136
        %1138 = vrot.lane.b32.xlu0 %v1110, 1
        %v1139 = vpop.permute.xlu0 %1138
        %1140 = vrot.lane.b32.xlu0 %v1111, 1
        %v1141 = vpop.permute.xlu0 %1140
        %v1142 = vsel %vm571, %v1123, %v1125
        %v1143 = vsel %vm571, %v1125, %v1127
        %v1144 = vsel %vm571, %v1127, %v1129
        %v1145 = vsel %vm571, %v1129, %v1131
        %v1146 = vsel %vm571, %v1133, %v1135
        %v1147 = vsel %vm571, %v1135, %v1137
        %v1148 = vsel %vm571, %v1137, %v1139
        %v1149 = vsel %vm571, %v1139, %v1141
        %v1160 = vsel %vm571, %v1102, %v1123
        %v1161 = vsel %vm571, %v1107, %v1133
        %1162 = vrot.lane.b32.xlu0 %v1102, 2
        %v1163 = vpop.permute.xlu0 %1162
        %1164 = vrot.lane.b32.xlu0 %v1103, 2
        %v1165 = vpop.permute.xlu0 %1164
        %1166 = vrot.lane.b32.xlu0 %v1104, 2
        %v1167 = vpop.permute.xlu0 %1166
        %1168 = vrot.lane.b32.xlu0 %v1105, 2
        %v1169 = vpop.permute.xlu0 %1168
        %1170 = vrot.lane.b32.xlu0 %v1106, 2
        %v1171 = vpop.permute.xlu0 %1170
        %1172 = vrot.lane.b32.xlu0 %v1107, 2
        %v1173 = vpop.permute.xlu0 %1172
        %1174 = vrot.lane.b32.xlu0 %v1108, 2
        %v1175 = vpop.permute.xlu0 %1174
        %1176 = vrot.lane.b32.xlu0 %v1109, 2
        %v1177 = vpop.permute.xlu0 %1176
        %1178 = vrot.lane.b32.xlu0 %v1110, 2
        %v1179 = vpop.permute.xlu0 %1178
        %1180 = vrot.lane.b32.xlu0 %v1111, 2
        %v1181 = vpop.permute.xlu0 %1180
        %v1182 = vsel %vm592, %v1163, %v1165
        %v1183 = vsel %vm592, %v1165, %v1167
        %v1184 = vsel %vm592, %v1167, %v1169
        %v1185 = vsel %vm592, %v1169, %v1171
        %v1186 = vsel %vm592, %v1173, %v1175
        %v1187 = vsel %vm592, %v1175, %v1177
        %v1188 = vsel %vm592, %v1177, %v1179
        %v1189 = vsel %vm592, %v1179, %v1181
        %v1200 = vsel %vm592, %v1102, %v1163
        %v1201 = vsel %vm592, %v1107, %v1173
        %v1202 = vpack.c.bf16 %v1107, %v1102
        %v1203 = vpack.c.bf16 %v1108, %v1103
        %v1204 = vpack.c.bf16 %v1109, %v1104
        %v1205 = vpack.c.bf16 %v1110, %v1105
        %v1206 = vpack.c.bf16 %v1111, %v1106
        %v1207 = vpack.c.bf16 %v1161, %v1160
        %v1208 = vpack.c.bf16 %v1146, %v1142
        %v1209 = vpack.c.bf16 %v1147, %v1143
        %v1210 = vpack.c.bf16 %v1148, %v1144
        %v1211 = vpack.c.bf16 %v1149, %v1145
        %v1212 = vpack.c.bf16 %v1201, %v1200
        %v1213 = vpack.c.bf16 %v1186, %v1182
        %v1214 = vpack.c.bf16 %v1187, %v1183
        %v1215 = vpack.c.bf16 %v1188, %v1184
        %v1216 = vpack.c.bf16 %v1189, %v1185
        %v1217 = vld [vmem:[%s8] sm:$0xf]
        %v1218 = vld [vmem:[%s8 + $0x4] sm:$0xf]
        %v1219 = vld [vmem:[%s9] sm:$0xff]
        %v1220 = vld [vmem:[%s9 + $0x8] sm:$0xff]
        %1222 = vset.pattern.permute.xlu0 0
        %1223 = vperm.xlu0 %1222, %v1219
        %v1224 = vpop.permute.xlu0 %1223
        %1227 = vset.pattern.permute.xlu0 0
        %1228 = vperm.xlu0 %1227, %v1220
        %v1229 = vpop.permute.xlu0 %1228
        %v1233 = vunpack.c.l.b16 %v1217
        %v1234 = vunpack.c.l.b16 %v1218
        %v1235 = vpack.c.b16 %v1234, %v1233
        %v1237 = vsel %vm877, %v1235, 0
        %1239 = vmatpush.bf16.msra.mxu0 0
        %1240 = vmatpush.bf16.msra.mxu0 0
        %1241 = vmatpush.bf16.msra.mxu0 0
        %1242 = vmatpush.bf16.msra.mxu0 0
        %1243 = vmatpush.bf16.msra.mxu0 0
        %1244 = vmatpush.bf16.msra.mxu0 %v1212
        %1245 = vmatpush.bf16.msra.mxu0 %v1207
        %1246 = vmatpush.bf16.msra.mxu0 %v1202
        %1247 = vmatmul.bf16.gmra.mxu0 %v1237
        %v1248 = vpop.f32.mrf.mxu0
        %v1249 = vadd.f32 %v1224, %v1248
        %v1250 = vpop.f32.mrf.mxu0
        %v1251 = vadd.f32 %v1229, %v1250
        %1252 = vdwg.mxu0
        %1253 = vmatpush.bf16.msra.mxu0 0
        %1254 = vmatpush.bf16.msra.mxu0 0
        %1255 = vmatpush.bf16.msra.mxu0 0
        %1256 = vmatpush.bf16.msra.mxu0 0
        %1257 = vmatpush.bf16.msra.mxu0 0
        %1258 = vmatpush.bf16.msra.mxu0 %v1213
        %1259 = vmatpush.bf16.msra.mxu0 %v1208
        %1260 = vmatpush.bf16.msra.mxu0 %v1203
        %1261 = vmatmul.bf16.gmra.mxu0 %v1237
        %v1262 = vpop.f32.mrf.mxu0
        %v1263 = vadd.f32 %v1224, %v1262
        %v1264 = vpop.f32.mrf.mxu0
        %v1265 = vadd.f32 %v1229, %v1264
        %1266 = vdwg.mxu0
        %1267 = vmatpush.bf16.msra.mxu0 0
        %1268 = vmatpush.bf16.msra.mxu0 0
        %1269 = vmatpush.bf16.msra.mxu0 0
        %1270 = vmatpush.bf16.msra.mxu0 0
        %1271 = vmatpush.bf16.msra.mxu0 0
        %1272 = vmatpush.bf16.msra.mxu0 %v1214
        %1273 = vmatpush.bf16.msra.mxu0 %v1209
        %1274 = vmatpush.bf16.msra.mxu0 %v1204
        %1275 = vmatmul.bf16.gmra.mxu0 %v1237
        %v1276 = vpop.f32.mrf.mxu0
        %v1277 = vadd.f32 %v1224, %v1276
        %v1278 = vpop.f32.mrf.mxu0
        %v1279 = vadd.f32 %v1229, %v1278
        %1280 = vdwg.mxu0
        %1281 = vmatpush.bf16.msra.mxu0 0
        %1282 = vmatpush.bf16.msra.mxu0 0
        %1283 = vmatpush.bf16.msra.mxu0 0
        %1284 = vmatpush.bf16.msra.mxu0 0
        %1285 = vmatpush.bf16.msra.mxu0 0
        %1286 = vmatpush.bf16.msra.mxu0 %v1215
        %1287 = vmatpush.bf16.msra.mxu0 %v1210
        %1288 = vmatpush.bf16.msra.mxu0 %v1205
        %1289 = vmatmul.bf16.gmra.mxu0 %v1237
        %v1290 = vpop.f32.mrf.mxu0
        %v1291 = vadd.f32 %v1224, %v1290
        %v1292 = vpop.f32.mrf.mxu0
        %v1293 = vadd.f32 %v1229, %v1292
        %1294 = vdwg.mxu0
        %1295 = vmatpush.bf16.msra.mxu0 0
        %1296 = vmatpush.bf16.msra.mxu0 0
        %1297 = vmatpush.bf16.msra.mxu0 0
        %1298 = vmatpush.bf16.msra.mxu0 0
        %1299 = vmatpush.bf16.msra.mxu0 0
        %1300 = vmatpush.bf16.msra.mxu0 %v1216
        %1301 = vmatpush.bf16.msra.mxu0 %v1211
        %1302 = vmatpush.bf16.msra.mxu0 %v1206
        %1303 = vmatmul.bf16.gmra.mxu0 %v1237
        %v1304 = vpop.f32.mrf.mxu0
        %v1305 = vadd.f32 %v1224, %v1304
        %v1306 = vpop.f32.mrf.mxu0
        %v1307 = vadd.f32 %v1229, %v1306
        %1308 = vdwg.mxu0
        %v1309 = vmax.f32 %v1249, 0.0
        %v1310 = vmax.f32 %v1263, 0.0
        %v1311 = vmax.f32 %v1277, 0.0
        %v1312 = vmax.f32 %v1291, 0.0
        %v1313 = vmax.f32 %v1305, 0.0
        %v1314 = vmax.f32 %v1251, 0.0
        %v1315 = vmax.f32 %v1265, 0.0
        %v1316 = vmax.f32 %v1279, 0.0
        %v1317 = vmax.f32 %v1293, 0.0
        %v1318 = vmax.f32 %v1307, 0.0
        %v1319 = vmul.f32 %v1309, %v733
        %v1320 = vmul.f32 %v1310, %v734
        %v1321 = vmul.f32 %v1311, %v735
        %v1322 = vmul.f32 %v1312, %v736
        %v1323 = vmul.f32 %v1313, %v737
        %v1324 = vmul.f32 %v1314, %v733
        %v1325 = vmul.f32 %v1315, %v734
        %v1326 = vmul.f32 %v1316, %v735
        %v1327 = vmul.f32 %v1317, %v736
        %v1328 = vmul.f32 %v1318, %v737
        %1339 = vrot.lane.b32.xlu0 %v1319, 1
        %v1340 = vpop.permute.xlu0 %1339
        %1341 = vrot.lane.b32.xlu0 %v1320, 1
        %v1342 = vpop.permute.xlu0 %1341
        %1343 = vrot.lane.b32.xlu0 %v1321, 1
        %v1344 = vpop.permute.xlu0 %1343
        %1345 = vrot.lane.b32.xlu0 %v1322, 1
        %v1346 = vpop.permute.xlu0 %1345
        %1347 = vrot.lane.b32.xlu0 %v1323, 1
        %v1348 = vpop.permute.xlu0 %1347
        %1349 = vrot.lane.b32.xlu0 %v1324, 1
        %v1350 = vpop.permute.xlu0 %1349
        %1351 = vrot.lane.b32.xlu0 %v1325, 1
        %v1352 = vpop.permute.xlu0 %1351
        %1353 = vrot.lane.b32.xlu0 %v1326, 1
        %v1354 = vpop.permute.xlu0 %1353
        %1355 = vrot.lane.b32.xlu0 %v1327, 1
        %v1356 = vpop.permute.xlu0 %1355
        %1357 = vrot.lane.b32.xlu0 %v1328, 1
        %v1358 = vpop.permute.xlu0 %1357
        %v1359 = vsel %vm571, %v1340, %v1342
        %v1360 = vsel %vm571, %v1342, %v1344
        %v1361 = vsel %vm571, %v1344, %v1346
        %v1362 = vsel %vm571, %v1346, %v1348
        %v1363 = vsel %vm571, %v1350, %v1352
        %v1364 = vsel %vm571, %v1352, %v1354
        %v1365 = vsel %vm571, %v1354, %v1356
        %v1366 = vsel %vm571, %v1356, %v1358
        %v1377 = vsel %vm571, %v1319, %v1340
        %v1378 = vsel %vm571, %v1324, %v1350
        %1379 = vrot.lane.b32.xlu0 %v1319, 2
        %v1380 = vpop.permute.xlu0 %1379
        %1381 = vrot.lane.b32.xlu0 %v1320, 2
        %v1382 = vpop.permute.xlu0 %1381
        %1383 = vrot.lane.b32.xlu0 %v1321, 2
        %v1384 = vpop.permute.xlu0 %1383
        %1385 = vrot.lane.b32.xlu0 %v1322, 2
        %v1386 = vpop.permute.xlu0 %1385
        %1387 = vrot.lane.b32.xlu0 %v1323, 2
        %v1388 = vpop.permute.xlu0 %1387
        %1389 = vrot.lane.b32.xlu0 %v1324, 2
        %v1390 = vpop.permute.xlu0 %1389
        %1391 = vrot.lane.b32.xlu0 %v1325, 2
        %v1392 = vpop.permute.xlu0 %1391
        %1393 = vrot.lane.b32.xlu0 %v1326, 2
        %v1394 = vpop.permute.xlu0 %1393
        %1395 = vrot.lane.b32.xlu0 %v1327, 2
        %v1396 = vpop.permute.xlu0 %1395
        %1397 = vrot.lane.b32.xlu0 %v1328, 2
        %v1398 = vpop.permute.xlu0 %1397
        %v1399 = vsel %vm592, %v1380, %v1382
        %v1400 = vsel %vm592, %v1382, %v1384
        %v1401 = vsel %vm592, %v1384, %v1386
        %v1402 = vsel %vm592, %v1386, %v1388
        %v1403 = vsel %vm592, %v1390, %v1392
        %v1404 = vsel %vm592, %v1392, %v1394
        %v1405 = vsel %vm592, %v1394, %v1396
        %v1406 = vsel %vm592, %v1396, %v1398
        %v1417 = vsel %vm592, %v1319, %v1380
        %v1418 = vsel %vm592, %v1324, %v1390
        %v1419 = vpack.c.bf16 %v1324, %v1319
        %v1420 = vpack.c.bf16 %v1325, %v1320
        %v1421 = vpack.c.bf16 %v1326, %v1321
        %v1422 = vpack.c.bf16 %v1327, %v1322
        %v1423 = vpack.c.bf16 %v1328, %v1323
        %v1424 = vpack.c.bf16 %v1378, %v1377
        %v1425 = vpack.c.bf16 %v1363, %v1359
        %v1426 = vpack.c.bf16 %v1364, %v1360
        %v1427 = vpack.c.bf16 %v1365, %v1361
        %v1428 = vpack.c.bf16 %v1366, %v1362
        %v1429 = vpack.c.bf16 %v1418, %v1417
        %v1430 = vpack.c.bf16 %v1403, %v1399
        %v1431 = vpack.c.bf16 %v1404, %v1400
        %v1432 = vpack.c.bf16 %v1405, %v1401
        %v1433 = vpack.c.bf16 %v1406, %v1402
        %v1434 = vld [vmem:[%s10] sm:$0xf]
        %v1435 = vld [vmem:[%s10 + $0x4] sm:$0xf]
        %v1436 = vld [vmem:[%s11] sm:$0xff]
        %v1437 = vld [vmem:[%s11 + $0x8] sm:$0xff]
        %1439 = vset.pattern.permute.xlu0 0
        %1440 = vperm.xlu0 %1439, %v1436
        %v1441 = vpop.permute.xlu0 %1440
        %1444 = vset.pattern.permute.xlu0 0
        %1445 = vperm.xlu0 %1444, %v1437
        %v1446 = vpop.permute.xlu0 %1445
        %v1450 = vunpack.c.l.b16 %v1434
        %v1451 = vunpack.c.l.b16 %v1435
        %v1452 = vpack.c.b16 %v1451, %v1450
        %v1454 = vsel %vm877, %v1452, 0
        %1456 = vmatpush.bf16.msra.mxu0 0
        %1457 = vmatpush.bf16.msra.mxu0 0
        %1458 = vmatpush.bf16.msra.mxu0 0
        %1459 = vmatpush.bf16.msra.mxu0 0
        %1460 = vmatpush.bf16.msra.mxu0 0
        %1461 = vmatpush.bf16.msra.mxu0 %v1429
        %1462 = vmatpush.bf16.msra.mxu0 %v1424
        %1463 = vmatpush.bf16.msra.mxu0 %v1419
        %1464 = vmatmul.bf16.gmra.mxu0 %v1454
        %v1465 = vpop.f32.mrf.mxu0
        %v1466 = vadd.f32 %v1441, %v1465
        %v1467 = vpop.f32.mrf.mxu0
        %v1468 = vadd.f32 %v1446, %v1467
        %1469 = vdwg.mxu0
        %1470 = vmatpush.bf16.msra.mxu0 0
        %1471 = vmatpush.bf16.msra.mxu0 0
        %1472 = vmatpush.bf16.msra.mxu0 0
        %1473 = vmatpush.bf16.msra.mxu0 0
        %1474 = vmatpush.bf16.msra.mxu0 0
        %1475 = vmatpush.bf16.msra.mxu0 %v1430
        %1476 = vmatpush.bf16.msra.mxu0 %v1425
        %1477 = vmatpush.bf16.msra.mxu0 %v1420
        %1478 = vmatmul.bf16.gmra.mxu0 %v1454
        %v1479 = vpop.f32.mrf.mxu0
        %v1480 = vadd.f32 %v1441, %v1479
        %v1481 = vpop.f32.mrf.mxu0
        %v1482 = vadd.f32 %v1446, %v1481
        %1483 = vdwg.mxu0
        %1484 = vmatpush.bf16.msra.mxu0 0
        %1485 = vmatpush.bf16.msra.mxu0 0
        %1486 = vmatpush.bf16.msra.mxu0 0
        %1487 = vmatpush.bf16.msra.mxu0 0
        %1488 = vmatpush.bf16.msra.mxu0 0
        %1489 = vmatpush.bf16.msra.mxu0 %v1431
        %1490 = vmatpush.bf16.msra.mxu0 %v1426
        %1491 = vmatpush.bf16.msra.mxu0 %v1421
        %1492 = vmatmul.bf16.gmra.mxu0 %v1454
        %v1493 = vpop.f32.mrf.mxu0
        %v1494 = vadd.f32 %v1441, %v1493
        %v1495 = vpop.f32.mrf.mxu0
        %v1496 = vadd.f32 %v1446, %v1495
        %1497 = vdwg.mxu0
        %1498 = vmatpush.bf16.msra.mxu0 0
        %1499 = vmatpush.bf16.msra.mxu0 0
        %1500 = vmatpush.bf16.msra.mxu0 0
        %1501 = vmatpush.bf16.msra.mxu0 0
        %1502 = vmatpush.bf16.msra.mxu0 0
        %1503 = vmatpush.bf16.msra.mxu0 %v1432
        %1504 = vmatpush.bf16.msra.mxu0 %v1427
        %1505 = vmatpush.bf16.msra.mxu0 %v1422
        %1506 = vmatmul.bf16.gmra.mxu0 %v1454
        %v1507 = vpop.f32.mrf.mxu0
        %v1508 = vadd.f32 %v1441, %v1507
        %v1509 = vpop.f32.mrf.mxu0
        %v1510 = vadd.f32 %v1446, %v1509
        %1511 = vdwg.mxu0
        %1512 = vmatpush.bf16.msra.mxu0 0
        %1513 = vmatpush.bf16.msra.mxu0 0
        %1514 = vmatpush.bf16.msra.mxu0 0
        %1515 = vmatpush.bf16.msra.mxu0 0
        %1516 = vmatpush.bf16.msra.mxu0 0
        %1517 = vmatpush.bf16.msra.mxu0 %v1433
        %1518 = vmatpush.bf16.msra.mxu0 %v1428
        %1519 = vmatpush.bf16.msra.mxu0 %v1423
        %1520 = vmatmul.bf16.gmra.mxu0 %v1454
        %v1521 = vpop.f32.mrf.mxu0
        %v1522 = vadd.f32 %v1441, %v1521
        %v1523 = vpop.f32.mrf.mxu0
        %v1524 = vadd.f32 %v1446, %v1523
        %1525 = vdwg.mxu0
        %v1526 = vmax.f32 %v1466, 0.0
        %v1527 = vmax.f32 %v1480, 0.0
        %v1528 = vmax.f32 %v1494, 0.0
        %v1529 = vmax.f32 %v1508, 0.0
        %v1530 = vmax.f32 %v1522, 0.0
        %v1531 = vmax.f32 %v1468, 0.0
        %v1532 = vmax.f32 %v1482, 0.0
        %v1533 = vmax.f32 %v1496, 0.0
        %v1534 = vmax.f32 %v1510, 0.0
        %v1535 = vmax.f32 %v1524, 0.0
        %v1536 = vadd.f32 %v1526, %v1102
        %v1537 = vadd.f32 %v1527, %v1103
        %v1538 = vadd.f32 %v1528, %v1104
        %v1539 = vadd.f32 %v1529, %v1105
        %v1540 = vadd.f32 %v1530, %v1106
        %v1541 = vadd.f32 %v1531, %v1107
        %v1542 = vadd.f32 %v1532, %v1108
        %v1543 = vadd.f32 %v1533, %v1109
        %v1544 = vadd.f32 %v1534, %v1110
        %v1545 = vadd.f32 %v1535, %v1111
        %v1546 = vmax.f32 %v1536, 0.0
        %v1547 = vmax.f32 %v1537, 0.0
        %v1548 = vmax.f32 %v1538, 0.0
        %v1549 = vmax.f32 %v1539, 0.0
        %v1550 = vmax.f32 %v1540, 0.0
        %v1551 = vmax.f32 %v1541, 0.0
        %v1552 = vmax.f32 %v1542, 0.0
        %v1553 = vmax.f32 %v1543, 0.0
        %v1554 = vmax.f32 %v1544, 0.0
        %v1555 = vmax.f32 %v1545, 0.0
        %v1556 = vmul.f32 %v1546, %v733
        %v1557 = vmul.f32 %v1547, %v734
        %v1558 = vmul.f32 %v1548, %v735
        %v1559 = vmul.f32 %v1549, %v736
        %v1560 = vmul.f32 %v1550, %v737
        %v1561 = vmul.f32 %v1551, %v733
        %v1562 = vmul.f32 %v1552, %v734
        %v1563 = vmul.f32 %v1553, %v735
        %v1564 = vmul.f32 %v1554, %v736
        %v1565 = vmul.f32 %v1555, %v737
        %1576 = vrot.lane.b32.xlu0 %v1556, 1
        %v1577 = vpop.permute.xlu0 %1576
        %1578 = vrot.lane.b32.xlu0 %v1557, 1
        %v1579 = vpop.permute.xlu0 %1578
        %1580 = vrot.lane.b32.xlu0 %v1558, 1
        %v1581 = vpop.permute.xlu0 %1580
        %1582 = vrot.lane.b32.xlu0 %v1559, 1
        %v1583 = vpop.permute.xlu0 %1582
        %1584 = vrot.lane.b32.xlu0 %v1560, 1
        %v1585 = vpop.permute.xlu0 %1584
        %1586 = vrot.lane.b32.xlu0 %v1561, 1
        %v1587 = vpop.permute.xlu0 %1586
        %1588 = vrot.lane.b32.xlu0 %v1562, 1
        %v1589 = vpop.permute.xlu0 %1588
        %1590 = vrot.lane.b32.xlu0 %v1563, 1
        %v1591 = vpop.permute.xlu0 %1590
        %1592 = vrot.lane.b32.xlu0 %v1564, 1
        %v1593 = vpop.permute.xlu0 %1592
        %1594 = vrot.lane.b32.xlu0 %v1565, 1
        %v1595 = vpop.permute.xlu0 %1594
        %v1596 = vsel %vm571, %v1577, %v1579
        %v1597 = vsel %vm571, %v1579, %v1581
        %v1598 = vsel %vm571, %v1581, %v1583
        %v1599 = vsel %vm571, %v1583, %v1585
        %v1600 = vsel %vm571, %v1587, %v1589
        %v1601 = vsel %vm571, %v1589, %v1591
        %v1602 = vsel %vm571, %v1591, %v1593
        %v1603 = vsel %vm571, %v1593, %v1595
        %v1614 = vsel %vm571, %v1556, %v1577
        %v1615 = vsel %vm571, %v1561, %v1587
        %1616 = vrot.lane.b32.xlu0 %v1556, 2
        %v1617 = vpop.permute.xlu0 %1616
        %1618 = vrot.lane.b32.xlu0 %v1557, 2
        %v1619 = vpop.permute.xlu0 %1618
        %1620 = vrot.lane.b32.xlu0 %v1558, 2
        %v1621 = vpop.permute.xlu0 %1620
        %1622 = vrot.lane.b32.xlu0 %v1559, 2
        %v1623 = vpop.permute.xlu0 %1622
        %1624 = vrot.lane.b32.xlu0 %v1560, 2
        %v1625 = vpop.permute.xlu0 %1624
        %1626 = vrot.lane.b32.xlu0 %v1561, 2
        %v1627 = vpop.permute.xlu0 %1626
        %1628 = vrot.lane.b32.xlu0 %v1562, 2
        %v1629 = vpop.permute.xlu0 %1628
        %1630 = vrot.lane.b32.xlu0 %v1563, 2
        %v1631 = vpop.permute.xlu0 %1630
        %1632 = vrot.lane.b32.xlu0 %v1564, 2
        %v1633 = vpop.permute.xlu0 %1632
        %1634 = vrot.lane.b32.xlu0 %v1565, 2
        %v1635 = vpop.permute.xlu0 %1634
        %v1636 = vsel %vm592, %v1617, %v1619
        %v1637 = vsel %vm592, %v1619, %v1621
        %v1638 = vsel %vm592, %v1621, %v1623
        %v1639 = vsel %vm592, %v1623, %v1625
        %v1640 = vsel %vm592, %v1627, %v1629
        %v1641 = vsel %vm592, %v1629, %v1631
        %v1642 = vsel %vm592, %v1631, %v1633
        %v1643 = vsel %vm592, %v1633, %v1635
        %v1654 = vsel %vm592, %v1556, %v1617
        %v1655 = vsel %vm592, %v1561, %v1627
        %v1656 = vpack.c.bf16 %v1561, %v1556
        %v1657 = vpack.c.bf16 %v1562, %v1557
        %v1658 = vpack.c.bf16 %v1563, %v1558
        %v1659 = vpack.c.bf16 %v1564, %v1559
        %v1660 = vpack.c.bf16 %v1565, %v1560
        %v1661 = vpack.c.bf16 %v1615, %v1614
        %v1662 = vpack.c.bf16 %v1600, %v1596
        %v1663 = vpack.c.bf16 %v1601, %v1597
        %v1664 = vpack.c.bf16 %v1602, %v1598
        %v1665 = vpack.c.bf16 %v1603, %v1599
        %v1666 = vpack.c.bf16 %v1655, %v1654
        %v1667 = vpack.c.bf16 %v1640, %v1636
        %v1668 = vpack.c.bf16 %v1641, %v1637
        %v1669 = vpack.c.bf16 %v1642, %v1638
        %v1670 = vpack.c.bf16 %v1643, %v1639
        %v1671 = vld [vmem:[%s12] sm:$0xf]
        %v1672 = vld [vmem:[%s12 + $0x4] sm:$0xf]
        %v1673 = vld [vmem:[%s13] sm:$0xff]
        %v1674 = vld [vmem:[%s13 + $0x8] sm:$0xff]
        %1676 = vset.pattern.permute.xlu0 0
        %1677 = vperm.xlu0 %1676, %v1673
        %v1678 = vpop.permute.xlu0 %1677
        %1681 = vset.pattern.permute.xlu0 0
        %1682 = vperm.xlu0 %1681, %v1674
        %v1683 = vpop.permute.xlu0 %1682
        %v1687 = vunpack.c.l.b16 %v1671
        %v1688 = vunpack.c.l.b16 %v1672
        %v1689 = vpack.c.b16 %v1688, %v1687
        %v1691 = vsel %vm877, %v1689, 0
        %1693 = vmatpush.bf16.msra.mxu0 0
        %1694 = vmatpush.bf16.msra.mxu0 0
        %1695 = vmatpush.bf16.msra.mxu0 0
        %1696 = vmatpush.bf16.msra.mxu0 0
        %1697 = vmatpush.bf16.msra.mxu0 0
        %1698 = vmatpush.bf16.msra.mxu0 %v1666
        %1699 = vmatpush.bf16.msra.mxu0 %v1661
        %1700 = vmatpush.bf16.msra.mxu0 %v1656
        %1701 = vmatmul.bf16.gmra.mxu0 %v1691
        %v1702 = vpop.f32.mrf.mxu0
        %v1703 = vadd.f32 %v1678, %v1702
        %v1704 = vpop.f32.mrf.mxu0
        %v1705 = vadd.f32 %v1683, %v1704
        %1706 = vdwg.mxu0
        %1707 = vmatpush.bf16.msra.mxu0 0
        %1708 = vmatpush.bf16.msra.mxu0 0
        %1709 = vmatpush.bf16.msra.mxu0 0
        %1710 = vmatpush.bf16.msra.mxu0 0
        %1711 = vmatpush.bf16.msra.mxu0 0
        %1712 = vmatpush.bf16.msra.mxu0 %v1667
        %1713 = vmatpush.bf16.msra.mxu0 %v1662
        %1714 = vmatpush.bf16.msra.mxu0 %v1657
        %1715 = vmatmul.bf16.gmra.mxu0 %v1691
        %v1716 = vpop.f32.mrf.mxu0
        %v1717 = vadd.f32 %v1678, %v1716
        %v1718 = vpop.f32.mrf.mxu0
        %v1719 = vadd.f32 %v1683, %v1718
        %1720 = vdwg.mxu0
        %1721 = vmatpush.bf16.msra.mxu0 0
        %1722 = vmatpush.bf16.msra.mxu0 0
        %1723 = vmatpush.bf16.msra.mxu0 0
        %1724 = vmatpush.bf16.msra.mxu0 0
        %1725 = vmatpush.bf16.msra.mxu0 0
        %1726 = vmatpush.bf16.msra.mxu0 %v1668
        %1727 = vmatpush.bf16.msra.mxu0 %v1663
        %1728 = vmatpush.bf16.msra.mxu0 %v1658
        %1729 = vmatmul.bf16.gmra.mxu0 %v1691
        %v1730 = vpop.f32.mrf.mxu0
        %v1731 = vadd.f32 %v1678, %v1730
        %v1732 = vpop.f32.mrf.mxu0
        %v1733 = vadd.f32 %v1683, %v1732
        %1734 = vdwg.mxu0
        %1735 = vmatpush.bf16.msra.mxu0 0
        %1736 = vmatpush.bf16.msra.mxu0 0
        %1737 = vmatpush.bf16.msra.mxu0 0
        %1738 = vmatpush.bf16.msra.mxu0 0
        %1739 = vmatpush.bf16.msra.mxu0 0
        %1740 = vmatpush.bf16.msra.mxu0 %v1669
        %1741 = vmatpush.bf16.msra.mxu0 %v1664
        %1742 = vmatpush.bf16.msra.mxu0 %v1659
        %1743 = vmatmul.bf16.gmra.mxu0 %v1691
        %v1744 = vpop.f32.mrf.mxu0
        %v1745 = vadd.f32 %v1678, %v1744
        %v1746 = vpop.f32.mrf.mxu0
        %v1747 = vadd.f32 %v1683, %v1746
        %1748 = vdwg.mxu0
        %1749 = vmatpush.bf16.msra.mxu0 0
        %1750 = vmatpush.bf16.msra.mxu0 0
        %1751 = vmatpush.bf16.msra.mxu0 0
        %1752 = vmatpush.bf16.msra.mxu0 0
        %1753 = vmatpush.bf16.msra.mxu0 0
        %1754 = vmatpush.bf16.msra.mxu0 %v1670
        %1755 = vmatpush.bf16.msra.mxu0 %v1665
        %1756 = vmatpush.bf16.msra.mxu0 %v1660
        %1757 = vmatmul.bf16.gmra.mxu0 %v1691
        %v1758 = vpop.f32.mrf.mxu0
        %v1759 = vadd.f32 %v1678, %v1758
        %v1760 = vpop.f32.mrf.mxu0
        %v1761 = vadd.f32 %v1683, %v1760
        %1762 = vdwg.mxu0
        %v1763 = vmax.f32 %v1703, 0.0
        %v1764 = vmax.f32 %v1717, 0.0
        %v1765 = vmax.f32 %v1731, 0.0
        %v1766 = vmax.f32 %v1745, 0.0
        %v1767 = vmax.f32 %v1759, 0.0
        %v1768 = vmax.f32 %v1705, 0.0
        %v1769 = vmax.f32 %v1719, 0.0
        %v1770 = vmax.f32 %v1733, 0.0
        %v1771 = vmax.f32 %v1747, 0.0
        %v1772 = vmax.f32 %v1761, 0.0
        %v1773 = vmul.f32 %v1763, %v733
        %v1774 = vmul.f32 %v1764, %v734
        %v1775 = vmul.f32 %v1765, %v735
        %v1776 = vmul.f32 %v1766, %v736
        %v1777 = vmul.f32 %v1767, %v737
        %v1778 = vmul.f32 %v1768, %v733
        %v1779 = vmul.f32 %v1769, %v734
        %v1780 = vmul.f32 %v1770, %v735
        %v1781 = vmul.f32 %v1771, %v736
        %v1782 = vmul.f32 %v1772, %v737
        %1793 = vrot.lane.b32.xlu0 %v1773, 1
        %v1794 = vpop.permute.xlu0 %1793
        %1795 = vrot.lane.b32.xlu0 %v1774, 1
        %v1796 = vpop.permute.xlu0 %1795
        %1797 = vrot.lane.b32.xlu0 %v1775, 1
        %v1798 = vpop.permute.xlu0 %1797
        %1799 = vrot.lane.b32.xlu0 %v1776, 1
        %v1800 = vpop.permute.xlu0 %1799
        %1801 = vrot.lane.b32.xlu0 %v1777, 1
        %v1802 = vpop.permute.xlu0 %1801
        %1803 = vrot.lane.b32.xlu0 %v1778, 1
        %v1804 = vpop.permute.xlu0 %1803
        %1805 = vrot.lane.b32.xlu0 %v1779, 1
        %v1806 = vpop.permute.xlu0 %1805
        %1807 = vrot.lane.b32.xlu0 %v1780, 1
        %v1808 = vpop.permute.xlu0 %1807
        %1809 = vrot.lane.b32.xlu0 %v1781, 1
        %v1810 = vpop.permute.xlu0 %1809
        %1811 = vrot.lane.b32.xlu0 %v1782, 1
        %v1812 = vpop.permute.xlu0 %1811
        %v1813 = vsel %vm571, %v1794, %v1796
        %v1814 = vsel %vm571, %v1796, %v1798
        %v1815 = vsel %vm571, %v1798, %v1800
        %v1816 = vsel %vm571, %v1800, %v1802
        %v1817 = vsel %vm571, %v1804, %v1806
        %v1818 = vsel %vm571, %v1806, %v1808
        %v1819 = vsel %vm571, %v1808, %v1810
        %v1820 = vsel %vm571, %v1810, %v1812
        %v1831 = vsel %vm571, %v1773, %v1794
        %v1832 = vsel %vm571, %v1778, %v1804
        %1833 = vrot.lane.b32.xlu0 %v1773, 2
        %v1834 = vpop.permute.xlu0 %1833
        %1835 = vrot.lane.b32.xlu0 %v1774, 2
        %v1836 = vpop.permute.xlu0 %1835
        %1837 = vrot.lane.b32.xlu0 %v1775, 2
        %v1838 = vpop.permute.xlu0 %1837
        %1839 = vrot.lane.b32.xlu0 %v1776, 2
        %v1840 = vpop.permute.xlu0 %1839
        %1841 = vrot.lane.b32.xlu0 %v1777, 2
        %v1842 = vpop.permute.xlu0 %1841
        %1843 = vrot.lane.b32.xlu0 %v1778, 2
        %v1844 = vpop.permute.xlu0 %1843
        %1845 = vrot.lane.b32.xlu0 %v1779, 2
        %v1846 = vpop.permute.xlu0 %1845
        %1847 = vrot.lane.b32.xlu0 %v1780, 2
        %v1848 = vpop.permute.xlu0 %1847
        %1849 = vrot.lane.b32.xlu0 %v1781, 2
        %v1850 = vpop.permute.xlu0 %1849
        %1851 = vrot.lane.b32.xlu0 %v1782, 2
        %v1852 = vpop.permute.xlu0 %1851
        %v1853 = vsel %vm592, %v1834, %v1836
        %v1854 = vsel %vm592, %v1836, %v1838
        %v1855 = vsel %vm592, %v1838, %v1840
        %v1856 = vsel %vm592, %v1840, %v1842
        %v1857 = vsel %vm592, %v1844, %v1846
        %v1858 = vsel %vm592, %v1846, %v1848
        %v1859 = vsel %vm592, %v1848, %v1850
        %v1860 = vsel %vm592, %v1850, %v1852
        %v1871 = vsel %vm592, %v1773, %v1834
        %v1872 = vsel %vm592, %v1778, %v1844
        %v1873 = vpack.c.bf16 %v1778, %v1773
        %v1874 = vpack.c.bf16 %v1779, %v1774
        %v1875 = vpack.c.bf16 %v1780, %v1775
        %v1876 = vpack.c.bf16 %v1781, %v1776
        %v1877 = vpack.c.bf16 %v1782, %v1777
        %v1878 = vpack.c.bf16 %v1832, %v1831
        %v1879 = vpack.c.bf16 %v1817, %v1813
        %v1880 = vpack.c.bf16 %v1818, %v1814
        %v1881 = vpack.c.bf16 %v1819, %v1815
        %v1882 = vpack.c.bf16 %v1820, %v1816
        %v1883 = vpack.c.bf16 %v1872, %v1871
        %v1884 = vpack.c.bf16 %v1857, %v1853
        %v1885 = vpack.c.bf16 %v1858, %v1854
        %v1886 = vpack.c.bf16 %v1859, %v1855
        %v1887 = vpack.c.bf16 %v1860, %v1856
        %v1888 = vld [vmem:[%s14] sm:$0xf]
        %v1889 = vld [vmem:[%s14 + $0x4] sm:$0xf]
        %v1890 = vld [vmem:[%s15] sm:$0xff]
        %v1891 = vld [vmem:[%s15 + $0x8] sm:$0xff]
        %1893 = vset.pattern.permute.xlu0 0
        %1894 = vperm.xlu0 %1893, %v1890
        %v1895 = vpop.permute.xlu0 %1894
        %1898 = vset.pattern.permute.xlu0 0
        %1899 = vperm.xlu0 %1898, %v1891
        %v1900 = vpop.permute.xlu0 %1899
        %v1904 = vunpack.c.l.b16 %v1888
        %v1905 = vunpack.c.l.b16 %v1889
        %v1906 = vpack.c.b16 %v1905, %v1904
        %v1908 = vsel %vm877, %v1906, 0
        %1910 = vmatpush.bf16.msra.mxu0 0
        %1911 = vmatpush.bf16.msra.mxu0 0
        %1912 = vmatpush.bf16.msra.mxu0 0
        %1913 = vmatpush.bf16.msra.mxu0 0
        %1914 = vmatpush.bf16.msra.mxu0 0
        %1915 = vmatpush.bf16.msra.mxu0 %v1883
        %1916 = vmatpush.bf16.msra.mxu0 %v1878
        %1917 = vmatpush.bf16.msra.mxu0 %v1873
        %1918 = vmatmul.bf16.gmra.mxu0 %v1908
        %v1919 = vpop.f32.mrf.mxu0
        %v1920 = vadd.f32 %v1895, %v1919
        %v1921 = vpop.f32.mrf.mxu0
        %v1922 = vadd.f32 %v1900, %v1921
        %1923 = vdwg.mxu0
        %1924 = vmatpush.bf16.msra.mxu0 0
        %1925 = vmatpush.bf16.msra.mxu0 0
        %1926 = vmatpush.bf16.msra.mxu0 0
        %1927 = vmatpush.bf16.msra.mxu0 0
        %1928 = vmatpush.bf16.msra.mxu0 0
        %1929 = vmatpush.bf16.msra.mxu0 %v1884
        %1930 = vmatpush.bf16.msra.mxu0 %v1879
        %1931 = vmatpush.bf16.msra.mxu0 %v1874
        %1932 = vmatmul.bf16.gmra.mxu0 %v1908
        %v1933 = vpop.f32.mrf.mxu0
        %v1934 = vadd.f32 %v1895, %v1933
        %v1935 = vpop.f32.mrf.mxu0
        %v1936 = vadd.f32 %v1900, %v1935
        %1937 = vdwg.mxu0
        %1938 = vmatpush.bf16.msra.mxu0 0
        %1939 = vmatpush.bf16.msra.mxu0 0
        %1940 = vmatpush.bf16.msra.mxu0 0
        %1941 = vmatpush.bf16.msra.mxu0 0
        %1942 = vmatpush.bf16.msra.mxu0 0
        %1943 = vmatpush.bf16.msra.mxu0 %v1885
        %1944 = vmatpush.bf16.msra.mxu0 %v1880
        %1945 = vmatpush.bf16.msra.mxu0 %v1875
        %1946 = vmatmul.bf16.gmra.mxu0 %v1908
        %v1947 = vpop.f32.mrf.mxu0
        %v1948 = vadd.f32 %v1895, %v1947
        %v1949 = vpop.f32.mrf.mxu0
        %v1950 = vadd.f32 %v1900, %v1949
        %1951 = vdwg.mxu0
        %1952 = vmatpush.bf16.msra.mxu0 0
        %1953 = vmatpush.bf16.msra.mxu0 0
        %1954 = vmatpush.bf16.msra.mxu0 0
        %1955 = vmatpush.bf16.msra.mxu0 0
        %1956 = vmatpush.bf16.msra.mxu0 0
        %1957 = vmatpush.bf16.msra.mxu0 %v1886
        %1958 = vmatpush.bf16.msra.mxu0 %v1881
        %1959 = vmatpush.bf16.msra.mxu0 %v1876
        %1960 = vmatmul.bf16.gmra.mxu0 %v1908
        %v1961 = vpop.f32.mrf.mxu0
        %v1962 = vadd.f32 %v1895, %v1961
        %v1963 = vpop.f32.mrf.mxu0
        %v1964 = vadd.f32 %v1900, %v1963
        %1965 = vdwg.mxu0
        %1966 = vmatpush.bf16.msra.mxu0 0
        %1967 = vmatpush.bf16.msra.mxu0 0
        %1968 = vmatpush.bf16.msra.mxu0 0
        %1969 = vmatpush.bf16.msra.mxu0 0
        %1970 = vmatpush.bf16.msra.mxu0 0
        %1971 = vmatpush.bf16.msra.mxu0 %v1887
        %1972 = vmatpush.bf16.msra.mxu0 %v1882
        %1973 = vmatpush.bf16.msra.mxu0 %v1877
        %1974 = vmatmul.bf16.gmra.mxu0 %v1908
        %v1975 = vpop.f32.mrf.mxu0
        %v1976 = vadd.f32 %v1895, %v1975
        %v1977 = vpop.f32.mrf.mxu0
        %v1978 = vadd.f32 %v1900, %v1977
        %1979 = vdwg.mxu0
        %v1980 = vmax.f32 %v1920, 0.0
        %v1981 = vmax.f32 %v1934, 0.0
        %v1982 = vmax.f32 %v1948, 0.0
        %v1983 = vmax.f32 %v1962, 0.0
        %v1984 = vmax.f32 %v1976, 0.0
        %v1985 = vmax.f32 %v1922, 0.0
        %v1986 = vmax.f32 %v1936, 0.0
        %v1987 = vmax.f32 %v1950, 0.0
        %v1988 = vmax.f32 %v1964, 0.0
        %v1989 = vmax.f32 %v1978, 0.0
        %v1990 = vadd.f32 %v1980, %v1556
        %v1991 = vadd.f32 %v1981, %v1557
        %v1992 = vadd.f32 %v1982, %v1558
        %v1993 = vadd.f32 %v1983, %v1559
        %v1994 = vadd.f32 %v1984, %v1560
        %v1995 = vadd.f32 %v1985, %v1561
        %v1996 = vadd.f32 %v1986, %v1562
        %v1997 = vadd.f32 %v1987, %v1563
        %v1998 = vadd.f32 %v1988, %v1564
        %v1999 = vadd.f32 %v1989, %v1565
        %v2000 = vmax.f32 %v1990, 0.0
        %v2001 = vmax.f32 %v1991, 0.0
        %v2002 = vmax.f32 %v1992, 0.0
        %v2003 = vmax.f32 %v1993, 0.0
        %v2004 = vmax.f32 %v1994, 0.0
        %v2005 = vmax.f32 %v1995, 0.0
        %v2006 = vmax.f32 %v1996, 0.0
        %v2007 = vmax.f32 %v1997, 0.0
        %v2008 = vmax.f32 %v1998, 0.0
        %v2009 = vmax.f32 %v1999, 0.0
        %v2010 = vmul.f32 %v2000, %v733
        %v2011 = vmul.f32 %v2001, %v734
        %v2012 = vmul.f32 %v2002, %v735
        %v2013 = vmul.f32 %v2003, %v736
        %v2014 = vmul.f32 %v2004, %v737
        %v2015 = vmul.f32 %v2005, %v733
        %v2016 = vmul.f32 %v2006, %v734
        %v2017 = vmul.f32 %v2007, %v735
        %v2018 = vmul.f32 %v2008, %v736
        %v2019 = vmul.f32 %v2009, %v737
        %v2020 = vpack.c.bf16 %v2011, %v2010
        %v2021 = vpack.c.bf16 %v2013, %v2012
        %v2022 = vpack.c.bf16 %v2014, %v2014
        %v2023 = vpack.c.bf16 %v2016, %v2015
        %v2024 = vpack.c.bf16 %v2018, %v2017
        %v2025 = vpack.c.bf16 %v2019, %v2019
        %2028 = vrot.lane.b32.xlu0 %v2020, 124
        %v2029 = vpop.permute.xlu0 %2028
        %2030 = vrot.lane.b32.xlu0 %v2023, 124
        %v2031 = vpop.permute.xlu0 %2030
        %vm2034 = vcmask 125952
        %2035 = vst.msk [vmem:[%s544] sm:$0xf] %vm2034, %v2029
        %2036 = vst.msk [vmem:[%s544 + $0x4] sm:$0xf] %vm2034, %v2031
        %2037 = vrot.lane.b32.xlu0 %v2020, 104
        %v2038 = vpop.permute.xlu0 %2037
        %2039 = vrot.lane.b32.xlu0 %v2023, 104
        %v2040 = vpop.permute.xlu0 %2039
        %s2043 = scalar_lea.vmem %s544, 8
        %2044 = vst.msk [vmem:[%s2043] sm:$0xf] %vm2034, %v2038
        %2045 = vst.msk [vmem:[%s2043 + $0x4] sm:$0xf] %vm2034, %v2040
        %2046 = vrot.lane.b32.xlu0 %v2020, 84
        %v2047 = vpop.permute.xlu0 %2046
        %2048 = vrot.lane.b32.xlu0 %v2023, 84
        %v2049 = vpop.permute.xlu0 %2048
        %s2052 = scalar_lea.vmem %s544, 16
        %2053 = vst.msk [vmem:[%s2052] sm:$0xf] %vm2034, %v2047
        %2054 = vst.msk [vmem:[%s2052 + $0x4] sm:$0xf] %vm2034, %v2049
        %2055 = vrot.lane.b32.xlu0 %v2020, 64
        %v2056 = vpop.permute.xlu0 %2055
        %2057 = vrot.lane.b32.xlu0 %v2023, 64
        %v2058 = vpop.permute.xlu0 %2057
        %s2061 = scalar_lea.vmem %s544, 24
        %2062 = vst.msk [vmem:[%s2061] sm:$0xf] %vm2034, %v2056
        %2063 = vst.msk [vmem:[%s2061 + $0x4] sm:$0xf] %vm2034, %v2058
        %2064 = vrot.lane.b32.xlu0 %v2020, 44
        %v2065 = vpop.permute.xlu0 %2064
        %2066 = vrot.lane.b32.xlu0 %v2023, 44
        %v2067 = vpop.permute.xlu0 %2066
        %s2070 = scalar_lea.vmem %s544, 32
        %2071 = vst.msk [vmem:[%s2070] sm:$0xf] %vm2034, %v2065
        %2072 = vst.msk [vmem:[%s2070 + $0x4] sm:$0xf] %vm2034, %v2067
        %2073 = vrot.lane.b32.xlu0 %v2020, 24
        %v2074 = vpop.permute.xlu0 %2073
        %2075 = vrot.lane.b32.xlu0 %v2023, 24
        %v2076 = vpop.permute.xlu0 %2075
        %s2079 = scalar_lea.vmem %s544, 40
        %2080 = vst.msk [vmem:[%s2079] sm:$0xf] %vm2034, %v2074
        %2081 = vst.msk [vmem:[%s2079 + $0x4] sm:$0xf] %vm2034, %v2076
        %2082 = vrot.lane.b32.xlu0 %v2020, 4
        %v2083 = vpop.permute.xlu0 %2082
        %2084 = vrot.lane.b32.xlu0 %v2023, 4
        %v2085 = vpop.permute.xlu0 %2084
        %v2086 = vrot.slane %v2083, 4
        %v2087 = vrot.slane %v2085, 4
        %vm2088 = vcmask 31744
        %v2089 = vsel %vm2088, %v2083, %v2086
        %v2090 = vsel %vm2088, %v2085, %v2087
        %s2093 = scalar_lea.vmem %s544, 48
        %2094 = vst.msk [vmem:[%s2093] sm:$0xf] %vm2034, %v2089
        %2095 = vst.msk [vmem:[%s2093 + $0x4] sm:$0xf] %vm2034, %v2090
        %2096 = vrot.lane.b32.xlu0 %v2020, 112
        %v2097 = vpop.permute.xlu0 %2096
        %2098 = vrot.lane.b32.xlu0 %v2023, 112
        %v2099 = vpop.permute.xlu0 %2098
        %v2100 = vrot.slane %v2097, 4
        %v2101 = vrot.slane %v2099, 4
        %s2104 = scalar_lea.vmem %s544, 56
        %2105 = vst.msk [vmem:[%s2104] sm:$0xf] %vm2034, %v2100
        %2106 = vst.msk [vmem:[%s2104 + $0x4] sm:$0xf] %vm2034, %v2101
        %2107 = vrot.lane.b32.xlu0 %v2020, 92
        %v2108 = vpop.permute.xlu0 %2107
        %2109 = vrot.lane.b32.xlu0 %v2023, 92
        %v2110 = vpop.permute.xlu0 %2109
        %v2111 = vrot.slane %v2108, 4
        %v2112 = vrot.slane %v2110, 4
        %s2115 = scalar_lea.vmem %s544, 64
        %2116 = vst.msk [vmem:[%s2115] sm:$0xf] %vm2034, %v2111
        %2117 = vst.msk [vmem:[%s2115 + $0x4] sm:$0xf] %vm2034, %v2112
        %2118 = vrot.lane.b32.xlu0 %v2020, 72
        %v2119 = vpop.permute.xlu0 %2118
        %2120 = vrot.lane.b32.xlu0 %v2023, 72
        %v2121 = vpop.permute.xlu0 %2120
        %v2122 = vrot.slane %v2119, 4
        %v2123 = vrot.slane %v2121, 4
        %s2126 = scalar_lea.vmem %s544, 72
        %2127 = vst.msk [vmem:[%s2126] sm:$0xf] %vm2034, %v2122
        %2128 = vst.msk [vmem:[%s2126 + $0x4] sm:$0xf] %vm2034, %v2123
        %2129 = vrot.lane.b32.xlu0 %v2020, 52
        %v2130 = vpop.permute.xlu0 %2129
        %2131 = vrot.lane.b32.xlu0 %v2023, 52
        %v2132 = vpop.permute.xlu0 %2131
        %v2133 = vrot.slane %v2130, 4
        %v2134 = vrot.slane %v2132, 4
        %s2137 = scalar_lea.vmem %s544, 80
        %2138 = vst.msk [vmem:[%s2137] sm:$0xf] %vm2034, %v2133
        %2139 = vst.msk [vmem:[%s2137 + $0x4] sm:$0xf] %vm2034, %v2134
        %2140 = vrot.lane.b32.xlu0 %v2020, 32
        %v2141 = vpop.permute.xlu0 %2140
        %2142 = vrot.lane.b32.xlu0 %v2023, 32
        %v2143 = vpop.permute.xlu0 %2142
        %v2144 = vrot.slane %v2141, 4
        %v2145 = vrot.slane %v2143, 4
        %s2148 = scalar_lea.vmem %s544, 88
        %2149 = vst.msk [vmem:[%s2148] sm:$0xf] %vm2034, %v2144
        %2150 = vst.msk [vmem:[%s2148 + $0x4] sm:$0xf] %vm2034, %v2145
        %2153 = vrot.lane.b32.xlu0 %v2020, 12
        %v2154 = vpop.permute.xlu0 %2153
        %2155 = vrot.lane.b32.xlu0 %v2021, 12
        %v2156 = vpop.permute.xlu0 %2155
        %2157 = vrot.lane.b32.xlu0 %v2023, 12
        %v2158 = vpop.permute.xlu0 %2157
        %2159 = vrot.lane.b32.xlu0 %v2024, 12
        %v2160 = vpop.permute.xlu0 %2159
        %v2161 = vrot.slane %v2154, 4
        %v2162 = vrot.slane %v2158, 4
        %vm2163 = vcmask 97280
        %v2164 = vsel %vm2163, %v2161, %v2156
        %v2165 = vsel %vm2163, %v2162, %v2160
        %s2168 = scalar_lea.vmem %s544, 96
        %2169 = vst.msk [vmem:[%s2168] sm:$0xf] %vm2034, %v2164
        %2170 = vst.msk [vmem:[%s2168 + $0x4] sm:$0xf] %vm2034, %v2165
        %2171 = vrot.lane.b32.xlu0 %v2021, 120
        %v2172 = vpop.permute.xlu0 %2171
        %2173 = vrot.lane.b32.xlu0 %v2024, 120
        %v2174 = vpop.permute.xlu0 %2173
        %s2177 = scalar_lea.vmem %s544, 104
        %2178 = vst.msk [vmem:[%s2177] sm:$0xf] %vm2034, %v2172
        %2179 = vst.msk [vmem:[%s2177 + $0x4] sm:$0xf] %vm2034, %v2174
        %2180 = vrot.lane.b32.xlu0 %v2021, 100
        %v2181 = vpop.permute.xlu0 %2180
        %2182 = vrot.lane.b32.xlu0 %v2024, 100
        %v2183 = vpop.permute.xlu0 %2182
        %s2186 = scalar_lea.vmem %s544, 112
        %2187 = vst.msk [vmem:[%s2186] sm:$0xf] %vm2034, %v2181
        %2188 = vst.msk [vmem:[%s2186 + $0x4] sm:$0xf] %vm2034, %v2183
        %2189 = vrot.lane.b32.xlu0 %v2021, 80
        %v2190 = vpop.permute.xlu0 %2189
        %2191 = vrot.lane.b32.xlu0 %v2024, 80
        %v2192 = vpop.permute.xlu0 %2191
        %s2195 = scalar_lea.vmem %s544, 120
        %2196 = vst.msk [vmem:[%s2195] sm:$0xf] %vm2034, %v2190
        %2197 = vst.msk [vmem:[%s2195 + $0x4] sm:$0xf] %vm2034, %v2192
        %2198 = vrot.lane.b32.xlu0 %v2021, 60
        %v2199 = vpop.permute.xlu0 %2198
        %2200 = vrot.lane.b32.xlu0 %v2024, 60
        %v2201 = vpop.permute.xlu0 %2200
        %s2204 = scalar_lea.vmem %s544, 128
        %2205 = vst.msk [vmem:[%s2204] sm:$0xf] %vm2034, %v2199
        %2206 = vst.msk [vmem:[%s2204 + $0x4] sm:$0xf] %vm2034, %v2201
        %2207 = vrot.lane.b32.xlu0 %v2021, 40
        %v2208 = vpop.permute.xlu0 %2207
        %2209 = vrot.lane.b32.xlu0 %v2024, 40
        %v2210 = vpop.permute.xlu0 %2209
        %s2213 = scalar_lea.vmem %s544, 136
        %2214 = vst.msk [vmem:[%s2213] sm:$0xf] %vm2034, %v2208
        %2215 = vst.msk [vmem:[%s2213 + $0x4] sm:$0xf] %vm2034, %v2210
        %2216 = vrot.lane.b32.xlu0 %v2021, 20
        %v2217 = vpop.permute.xlu0 %2216
        %2218 = vrot.lane.b32.xlu0 %v2024, 20
        %v2219 = vpop.permute.xlu0 %2218
        %s2222 = scalar_lea.vmem %s544, 144
        %2223 = vst.msk [vmem:[%s2222] sm:$0xf] %vm2034, %v2217
        %2224 = vst.msk [vmem:[%s2222 + $0x4] sm:$0xf] %vm2034, %v2219
        %v2225 = vrot.slane %v2021, 4
        %v2226 = vrot.slane %v2024, 4
        %s2229 = scalar_lea.vmem %s544, 152
        %2230 = vst.msk [vmem:[%s2229] sm:$0xf] %vm2034, %v2225
        %2231 = vst.msk [vmem:[%s2229 + $0x4] sm:$0xf] %vm2034, %v2226
        %2232 = vrot.lane.b32.xlu0 %v2021, 108
        %v2233 = vpop.permute.xlu0 %2232
        %2234 = vrot.lane.b32.xlu0 %v2024, 108
        %v2235 = vpop.permute.xlu0 %2234
        %v2236 = vrot.slane %v2233, 4
        %v2237 = vrot.slane %v2235, 4
        %s2240 = scalar_lea.vmem %s544, 160
        %2241 = vst.msk [vmem:[%s2240] sm:$0xf] %vm2034, %v2236
        %2242 = vst.msk [vmem:[%s2240 + $0x4] sm:$0xf] %vm2034, %v2237
        %2243 = vrot.lane.b32.xlu0 %v2021, 88
        %v2244 = vpop.permute.xlu0 %2243
        %2245 = vrot.lane.b32.xlu0 %v2024, 88
        %v2246 = vpop.permute.xlu0 %2245
        %v2247 = vrot.slane %v2244, 4
        %v2248 = vrot.slane %v2246, 4
        %s2251 = scalar_lea.vmem %s544, 168
        %2252 = vst.msk [vmem:[%s2251] sm:$0xf] %vm2034, %v2247
        %2253 = vst.msk [vmem:[%s2251 + $0x4] sm:$0xf] %vm2034, %v2248
        %2254 = vrot.lane.b32.xlu0 %v2021, 68
        %v2255 = vpop.permute.xlu0 %2254
        %2256 = vrot.lane.b32.xlu0 %v2024, 68
        %v2257 = vpop.permute.xlu0 %2256
        %v2258 = vrot.slane %v2255, 4
        %v2259 = vrot.slane %v2257, 4
        %s2262 = scalar_lea.vmem %s544, 176
        %2263 = vst.msk [vmem:[%s2262] sm:$0xf] %vm2034, %v2258
        %2264 = vst.msk [vmem:[%s2262 + $0x4] sm:$0xf] %vm2034, %v2259
        %2265 = vrot.lane.b32.xlu0 %v2021, 48
        %v2266 = vpop.permute.xlu0 %2265
        %2267 = vrot.lane.b32.xlu0 %v2024, 48
        %v2268 = vpop.permute.xlu0 %2267
        %v2269 = vrot.slane %v2266, 4
        %v2270 = vrot.slane %v2268, 4
        %s2273 = scalar_lea.vmem %s544, 184
        %2274 = vst.msk [vmem:[%s2273] sm:$0xf] %vm2034, %v2269
        %2275 = vst.msk [vmem:[%s2273 + $0x4] sm:$0xf] %vm2034, %v2270
        %2276 = vrot.lane.b32.xlu0 %v2021, 28
        %v2277 = vpop.permute.xlu0 %2276
        %2278 = vrot.lane.b32.xlu0 %v2024, 28
        %v2279 = vpop.permute.xlu0 %2278
        %v2280 = vrot.slane %v2277, 4
        %v2281 = vrot.slane %v2279, 4
        %s2284 = scalar_lea.vmem %s544, 192
        %2285 = vst.msk [vmem:[%s2284] sm:$0xf] %vm2034, %v2280
        %2286 = vst.msk [vmem:[%s2284 + $0x4] sm:$0xf] %vm2034, %v2281
        %2289 = vrot.lane.b32.xlu0 %v2021, 8
        %v2290 = vpop.permute.xlu0 %2289
        %2291 = vrot.lane.b32.xlu0 %v2022, 8
        %v2292 = vpop.permute.xlu0 %2291
        %2293 = vrot.lane.b32.xlu0 %v2024, 8
        %v2294 = vpop.permute.xlu0 %2293
        %2295 = vrot.lane.b32.xlu0 %v2025, 8
        %v2296 = vpop.permute.xlu0 %2295
        %v2297 = vrot.slane %v2290, 4
        %v2298 = vrot.slane %v2294, 4
        %vm2299 = vcmask 64512
        %v2300 = vsel %vm2299, %v2297, %v2292
        %v2301 = vsel %vm2299, %v2298, %v2296
        %s2304 = scalar_lea.vmem %s544, 200
        %2305 = vst.msk [vmem:[%s2304] sm:$0xf] %vm2034, %v2300
        %2306 = vst.msk [vmem:[%s2304 + $0x4] sm:$0xf] %vm2034, %v2301
        %2307 = vrot.lane.b32.xlu0 %v2022, 116
        %v2308 = vpop.permute.xlu0 %2307
        %2309 = vrot.lane.b32.xlu0 %v2025, 116
        %v2310 = vpop.permute.xlu0 %2309
        %s2313 = scalar_lea.vmem %s544, 208
        %2314 = vst.msk [vmem:[%s2313] sm:$0xf] %vm2034, %v2308
        %2315 = vst.msk [vmem:[%s2313 + $0x4] sm:$0xf] %vm2034, %v2310
        %2316 = vrot.lane.b32.xlu0 %v2022, 96
        %v2317 = vpop.permute.xlu0 %2316
        %2318 = vrot.lane.b32.xlu0 %v2025, 96
        %v2319 = vpop.permute.xlu0 %2318
        %s2322 = scalar_lea.vmem %s544, 216
        %2323 = vst.msk [vmem:[%s2322] sm:$0xf] %vm2034, %v2317
        %2324 = vst.msk [vmem:[%s2322 + $0x4] sm:$0xf] %vm2034, %v2319
        %2325 = vrot.lane.b32.xlu0 %v2022, 76
        %v2326 = vpop.permute.xlu0 %2325
        %2327 = vrot.lane.b32.xlu0 %v2025, 76
        %v2328 = vpop.permute.xlu0 %2327
        %s2331 = scalar_lea.vmem %s544, 224
        %2332 = vst.msk [vmem:[%s2331] sm:$0xf] %vm2034, %v2326
        %2333 = vst.msk [vmem:[%s2331 + $0x4] sm:$0xf] %vm2034, %v2328
        %2334 = vrot.lane.b32.xlu0 %v2022, 56
        %v2335 = vpop.permute.xlu0 %2334
        %2336 = vrot.lane.b32.xlu0 %v2025, 56
        %v2337 = vpop.permute.xlu0 %2336
        %s2340 = scalar_lea.vmem %s544, 232
        %2341 = vst.msk [vmem:[%s2340] sm:$0xf] %vm2034, %v2335
        %2342 = vst.msk [vmem:[%s2340 + $0x4] sm:$0xf] %vm2034, %v2337
        %2343 = vrot.lane.b32.xlu0 %v2022, 36
        %v2344 = vpop.permute.xlu0 %2343
        %2345 = vrot.lane.b32.xlu0 %v2025, 36
        %v2346 = vpop.permute.xlu0 %2345
        %s2349 = scalar_lea.vmem %s544, 240
        %2350 = vst.msk [vmem:[%s2349] sm:$0xf] %vm2034, %v2344
        %2351 = vst.msk [vmem:[%s2349 + $0x4] sm:$0xf] %vm2034, %v2346
        %2352 = vrot.lane.b32.xlu0 %v2022, 16
        %v2353 = vpop.permute.xlu0 %2352
        %2354 = vrot.lane.b32.xlu0 %v2025, 16
        %v2355 = vpop.permute.xlu0 %2354
        %s2358 = scalar_lea.vmem %s544, 248
        %2359 = vst.msk [vmem:[%s2358] sm:$0xf] %vm2034, %v2353
        %2360 = vst.msk [vmem:[%s2358 + $0x4] sm:$0xf] %vm2034, %v2355
        %s2361 = smul.u32 32, %s30
        %p2362 = scmp.lt.s32.totalorder %s2361, 63
        %s2363 = scalar_select %p2362, %s2361, 63
        %s2364 = smul.addr %s2363, 2
        %s2365 = smul.addr %s2364, 4
        %s2366 = scalar_lea.vmem %s16, %s2365
        // Predicated region
        $region89: #{tpu_custom_call.1} parent=83 // pred_check
          %p2367 = pneg %p389
        $region90: #{tpu_custom_call.1} parent=83 // pred_check_branch
          %2369 = sbr.rel (%p2367) target = $region92
        $region91: #{tpu_custom_call.1} parent=83 // pred_region
          %s2370 = smul.u32 32, %s30
        $region92: #{tpu_custom_call.1} parent=83 // pred_fallthru
          _
      $region84: #{tpu_custom_call.1} parent=5 // pred_fallthru
        _
      %p2371 = scmp.le.s32.totalorder 2, %s25
      // Predicated region
      $region93: #{tpu_custom_call.1} parent=5 // pred_check
        %p2372 = pneg %p2371
      $region94: #{tpu_custom_call.1} parent=5 // pred_check_branch
        %2374 = sbr.rel (%p2372) target = $region96
      $region95: #{tpu_custom_call.1} parent=5 // pred_region
        %s2375 = ssub.s32 %s25, 2
        // Predicated region
        $region97: #{tpu_custom_call.1} parent=95 // pred_check
          %p2376 = pneg %p395
        $region98: #{tpu_custom_call.1} parent=95 // pred_check_branch
          %2378 = sbr.rel (%p2376) target = $region100
        $region99: #{tpu_custom_call.1} parent=95 // pred_region
          %s2379 = smul.u32 32, %s31
          %p2380 = scmp.lt.s32.totalorder %s2379, 63
          %s2381 = scalar_select %p2380, %s2379, 63
          %s2382 = smul.addr %s2381, 2
          %s2383 = smul.addr %s2382, 4
          %s2384 = scalar_lea.vmem %s16, %s2383
        $region100: #{tpu_custom_call.1} parent=95 // pred_fallthru
          _
      $region96: #{tpu_custom_call.1} parent=5 // pred_fallthru
        _
    $region6: #{tpu_custom_call.1} parent=1 // loop_footer
      %s29 = sadd.s32 1, %s25
    $region7: #{tpu_custom_call.1} parent=1 // loop_footer_branch
      %24 = sbr.rel target = $region3
    $region8: #{tpu_custom_call.1} parent=1 // loop_exit
      _
    %2385 = vsyncpa [#allocation3], 1
    %s2386 = scalar_lea.sflag [#allocation3], 1
    %2387 = vsyncpa %s2386, 1

</llo_original>
